<compile_context>
chip_gen: v6e
topology: v6e:2x2x1
jax: 0.10.0
libtpu: 0.0.40
codegen_flags: <defaults>
</compile_context>

<pallas_src>
import jax
import jax.numpy as jnp
from jax.experimental import pallas as pl
from jax.experimental.pallas import tpu as pltpu

INPUT_SIZE = 28
HIDDEN = 64
NUM_CLASSES = 10
NGATES = 4

F_PAD = 32                  # input features padded 28 -> 32 (contraction pad)
G4 = NGATES * HIDDEN        # 256 packed gate lanes (no per-gate padding)
OUT_PAD = 128               # classifier output padded 10 -> 128 (dense store)

# Kernel gate order is [i, f, o, g]; PyTorch LSTM order is [i, f, g, o].
_PT_TO_KERNEL_GATE = jnp.array([0, 1, 3, 2])


def lstm_classifier_kernel(x_ref,      # (T, BB, F_PAD)     bf16
                           w_ih_ref,   # (F_PAD, 4*H)       bf16
                           w_hh_ref,   # (H, 4*H)           bf16
                           b_ref,      # (1, 4*H)           f32  (b_ih + b_hh)
                           w_out_ref,  # (H, OUT_PAD)       bf16
                           b_out_ref,  # (1, OUT_PAD)       f32
                           out_ref,    # (BB, OUT_PAD)      f32
                           xg_scr):    # VMEM (T*BB, 4*H)   bf16
    T, BB, _ = x_ref.shape
    G = HIDDEN

    # 1) Fused input projection for ALL timesteps as one MXU matmul; bias is
    #    folded in once.  Stored bf16 (f32 accumulate) to halve VMEM traffic.
    x2 = x_ref[...].reshape(T * BB, F_PAD)
    xg_scr[...] = (jnp.dot(x2, w_ih_ref[...],
                           preferred_element_type=jnp.float32)
                   + b_ref[...]).astype(jnp.bfloat16)

    # Same (64, 256) bf16 RHS reused for every recurrent step.
    w_hh = w_hh_ref[...]

    # 2) t = 0 peeled: h0 = c0 = 0  ->  no h @ W_hh matmul, no f*c term.
    g0 = xg_scr[0:BB, :].astype(jnp.float32)
    i0 = jax.nn.sigmoid(g0[:, 0:G])
    o0 = jax.nn.sigmoid(g0[:, 2 * G:3 * G])
    gg = jnp.tanh(g0[:, 3 * G:4 * G])
    c = i0 * gg
    h = o0 * jnp.tanh(c)

    # 3) t = 1 .. T-1 fully unrolled (T static & small) serial recurrence.
    for t in range(1, T):
        gates = (xg_scr[t * BB:(t + 1) * BB, :].astype(jnp.float32)
                 + jnp.dot(h.astype(jnp.bfloat16), w_hh,
                           preferred_element_type=jnp.float32))
        sig = jax.nn.sigmoid(gates[:, 0:3 * G])       # [i | f | o] one EUP pass
        g = jnp.tanh(gates[:, 3 * G:4 * G])           # g gate
        i_g = sig[:, 0:G]
        f_g = sig[:, G:2 * G]
        o_g = sig[:, 2 * G:3 * G]
        c = f_g * c + i_g * g
        h = o_g * jnp.tanh(c)

    # 4) Classifier head on last hidden state; 128-lane dense store.
    out_ref[...] = (jnp.dot(h.astype(jnp.bfloat16), w_out_ref[...],
                            preferred_element_type=jnp.float32)
                    + b_out_ref[...])


def prepare_params(w_ih, w_hh, b_ih, b_hh, w_out, b_out):
    """One-time weight prep: gate reorder [i,f,o,g], transpose, pad, bf16.

    NOTE: padded rows/cols are exactly zero; the kernel relies on zero padding
    of the feature-contraction rows and classifier columns only (h/c carry no
    padded lanes), so non-zero initial state etc. would need re-verification.
    """
    def gate_pack(w, in_dim, in_pad):
        # w: (4*H, in_dim), PyTorch gate order i, f, g, o.
        w4 = w.astype(jnp.float32).reshape(NGATES, HIDDEN, in_dim)
        w4 = w4[_PT_TO_KERNEL_GATE]                                 # -> i,f,o,g
        wt = jnp.transpose(w4, (2, 0, 1)).reshape(in_dim, G4)       # (in, 4H)
        out = jnp.zeros((in_pad, G4), jnp.float32).at[:in_dim].set(wt)
        return out.astype(jnp.bfloat16)

    w_ih_p = gate_pack(w_ih, INPUT_SIZE, F_PAD)
    w_hh_p = gate_pack(w_hh, HIDDEN, HIDDEN)

    b4 = (b_ih + b_hh).astype(jnp.float32).reshape(NGATES, HIDDEN)
    b_p = b4[_PT_TO_KERNEL_GATE].reshape(1, G4)

    w_out_p = (jnp.zeros((HIDDEN, OUT_PAD), jnp.float32)
               .at[:, :NUM_CLASSES].set(jnp.transpose(w_out).astype(jnp.float32))
               .astype(jnp.bfloat16))
    b_out_p = (jnp.zeros((1, OUT_PAD), jnp.float32)
               .at[0, :NUM_CLASSES].set(b_out.astype(jnp.float32)))
    return w_ih_p, w_hh_p, b_p, w_out_p, b_out_p


def _batch_tiling(B):
    Bp = max(16, ((B + 15) // 16) * 16)     # bf16 packs 16 sublanes per vreg
    BB = min(Bp, 128)                        # batch block per grid step
    nblocks = -(-Bp // BB)
    return nblocks * BB, BB


@jax.jit
def rnn_classifier_fwd(x_btf, w_ih_p, w_hh_p, b_p, w_out_p, b_out_p):
    """x_btf: (B, T, INPUT_SIZE) float32 (batch-first, like PyTorch)."""
    B, T, F = x_btf.shape
    Bp, BB = _batch_tiling(B)

    # time-major, pad batch -> Bp and features 28 -> 32 (fused into this jit)
    x_t = jnp.transpose(x_btf, (1, 0, 2)).astype(jnp.bfloat16)     # (T, B, F)
    x_pad = jnp.zeros((T, Bp, F_PAD), jnp.bfloat16).at[:, :B, :F].set(x_t)

    grid_spec = pltpu.PrefetchScalarGridSpec(
        num_scalar_prefetch=0,
        grid=(Bp // BB,),
        in_specs=[
            pl.BlockSpec((T, BB, F_PAD), lambda b: (0, b, 0)),
            pl.BlockSpec((F_PAD, G4), lambda b: (0, 0)),
            pl.BlockSpec((HIDDEN, G4), lambda b: (0, 0)),
            pl.BlockSpec((1, G4), lambda b: (0, 0)),
            pl.BlockSpec((HIDDEN, OUT_PAD), lambda b: (0, 0)),
            pl.BlockSpec((1, OUT_PAD), lambda b: (0, 0)),
        ],
        out_specs=pl.BlockSpec((BB, OUT_PAD), lambda b: (b, 0)),
        scratch_shapes=[pltpu.VMEM((T * BB, G4), jnp.bfloat16)],
    )

    out_pad = pl.pallas_call(
        lstm_classifier_kernel,
        out_shape=jax.ShapeDtypeStruct((Bp, OUT_PAD), jnp.float32),
        grid_spec=grid_spec,
        compiler_params=pltpu.CompilerParams(
            dimension_semantics=("parallel",)),       # batch blocks -> 2nd TC on v7x
    )(x_pad, w_ih_p, w_hh_p, b_p, w_out_p, b_out_p)

    return out_pad[:B, :NUM_CLASSES]


def _init_params(key):
    """PyTorch-style U(-1/sqrt(H), 1/sqrt(H)) init."""
    k = 1.0 / jnp.sqrt(jnp.float32(HIDDEN))
    keys = jax.random.split(key, 6)
    w_ih = jax.random.uniform(keys[0], (4 * HIDDEN, INPUT_SIZE), jnp.float32, -k, k)
    w_hh = jax.random.uniform(keys[1], (4 * HIDDEN, HIDDEN), jnp.float32, -k, k)
    b_ih = jax.random.uniform(keys[2], (4 * HIDDEN,), jnp.float32, -k, k)
    b_hh = jax.random.uniform(keys[3], (4 * HIDDEN,), jnp.float32, -k, k)
    w_out = jax.random.uniform(keys[4], (NUM_CLASSES, HIDDEN), jnp.float32, -k, k)
    b_out = jax.random.uniform(keys[5], (NUM_CLASSES,), jnp.float32, -k, k)
    return w_ih, w_hh, b_ih, b_hh, w_out, b_out


def _lstm_ref(x, w_ih, w_hh, b_ih, b_hh, w_out, b_out):
    """Pure-JAX float32 reference (PyTorch LSTM semantics, batch_first)."""
    B, T, _ = x.shape
    h = jnp.zeros((B, HIDDEN), jnp.float32)
    c = jnp.zeros((B, HIDDEN), jnp.float32)
    for t in range(T):
        gates = x[:, t] @ w_ih.T + b_ih + h @ w_hh.T + b_hh
        i, f, g, o = jnp.split(gates, 4, axis=-1)
        i, f, o = jax.nn.sigmoid(i), jax.nn.sigmoid(f), jax.nn.sigmoid(o)
        g = jnp.tanh(g)
        c = f * c + i * g
        h = o * jnp.tanh(c)
    return h @ w_out.T + b_out


if __name__ == "__main__":
    key = jax.random.PRNGKey(0)
    key_x, key_p = jax.random.split(key)

    B, T = 2, 8  # small batch, short sequence of 28-dim "rows"
    x = jax.random.normal(key_x, (B, T, INPUT_SIZE), jnp.float32)
    params = _init_params(key_p)

    packed = prepare_params(*params)           # one-time weight prep (hoisted)
    out = rnn_classifier_fwd(x, *packed)
    out = jax.block_until_ready(out)
    assert out.shape == (B, NUM_CLASSES)

    # Semantics check against a float32 reference (bf16-weight tolerance).
    ref = _lstm_ref(x, *params)
    assert float(jnp.max(jnp.abs(out - ref))) < 5e-2

    print("KERNEL_OK")
</pallas_src>

<mosaic_0001>
module attributes {stable_mosaic.version = 11 : i64} {
  func.func @lstm_classifier_kernel(%arg0: i32, %arg1: memref<8x16x32xbf16, #tpu.memory_space<vmem>>, %arg2: memref<32x256xbf16, #tpu.memory_space<vmem>>, %arg3: memref<64x256xbf16, #tpu.memory_space<vmem>>, %arg4: memref<1x256xf32, #tpu.memory_space<vmem>>, %arg5: memref<64x128xbf16, #tpu.memory_space<vmem>>, %arg6: memref<1x128xf32, #tpu.memory_space<vmem>>, %arg7: memref<16x128xf32, #tpu.memory_space<vmem>>, %arg8: memref<128x256xbf16, #tpu.memory_space<vmem>>) attributes {dimension_semantics = [#tpu.dimension_semantics<parallel>], iteration_bounds = array<i64: 1>, scalar_prefetch = 0 : i64, scratch_operands = 1 : i64, tpu.core_type = #tpu.core_type<tc>, window_params = [{transform_indices = @transform_0, window_bounds = array<i64: 8, 16, 32>}, {pipeline_mode = #tpu.pipeline_mode<synchronous>, transform_indices = @transform_1, window_bounds = array<i64: 32, 256>}, {pipeline_mode = #tpu.pipeline_mode<synchronous>, transform_indices = @transform_2, window_bounds = array<i64: 64, 256>}, {pipeline_mode = #tpu.pipeline_mode<synchronous>, transform_indices = @transform_3, window_bounds = array<i64: 1, 256>}, {pipeline_mode = #tpu.pipeline_mode<synchronous>, transform_indices = @transform_4, window_bounds = array<i64: 64, 128>}, {pipeline_mode = #tpu.pipeline_mode<synchronous>, transform_indices = @transform_5, window_bounds = array<i64: 1, 128>}, {transform_indices = @transform_6, window_bounds = array<i64: 16, 128>}]} {
    %c0 = arith.constant 0 : index
    %c0_0 = arith.constant 0 : index
    %c0_1 = arith.constant 0 : index
    %0 = vector.load %arg1[%c0, %c0_0, %c0_1] : memref<8x16x32xbf16, #tpu.memory_space<vmem>>, vector<8x16x32xbf16>
    %1 = vector.shape_cast %0 : vector<8x16x32xbf16> to vector<128x32xbf16>
    %c0_2 = arith.constant 0 : index
    %c0_3 = arith.constant 0 : index
    %2 = vector.load %arg2[%c0_2, %c0_3] : memref<32x256xbf16, #tpu.memory_space<vmem>>, vector<32x256xbf16>
    %cst = arith.constant dense<0.000000e+00> : vector<128x256xf32>
    %3 = tpu.matmul %1, %2, %cst {dimension_numbers = #tpu.dot_dimension_numbers<[1], [0], [0], [1], [0, 0, 1, 1], [], []>} : vector<128x32xbf16>, vector<32x256xbf16>, vector<128x256xf32> -> vector<128x256xf32>
    %c0_4 = arith.constant 0 : index
    %c0_5 = arith.constant 0 : index
    %4 = vector.load %arg4[%c0_4, %c0_5] : memref<1x256xf32, #tpu.memory_space<vmem>>, vector<1x256xf32>
    %5 = vector.broadcast %4 : vector<1x256xf32> to vector<128x256xf32>
    %6 = arith.addf %3, %5 : vector<128x256xf32>
    %7 = arith.truncf %6 : vector<128x256xf32> to vector<128x256xbf16>
    %c0_6 = arith.constant 0 : index
    %c0_7 = arith.constant 0 : index
    %8 = vector.load %arg8[%c0_6, %c0_7] : memref<128x256xbf16, #tpu.memory_space<vmem>>, vector<128x256xbf16>
    tpu.vector_store %arg8[%c0_6, %c0_7], %7 {strides = array<i32>} : memref<128x256xbf16, #tpu.memory_space<vmem>>, vector<128x256xbf16>,
    %c0_8 = arith.constant 0 : index
    %c0_9 = arith.constant 0 : index
    %9 = vector.load %arg3[%c0_8, %c0_9] : memref<64x256xbf16, #tpu.memory_space<vmem>>, vector<64x256xbf16>
    %c0_10 = arith.constant 0 : index
    %c0_11 = arith.constant 0 : index
    %10 = vector.load %arg8[%c0_10, %c0_11] : memref<128x256xbf16, #tpu.memory_space<vmem>>, vector<16x256xbf16>
    %11 = arith.extf %10 : vector<16x256xbf16> to vector<16x256xf32>
    %12 = vector.extract_strided_slice %11 {offsets = [0, 0], sizes = [16, 64], strides = [1, 1]} : vector<16x256xf32> to vector<16x64xf32>
    %13 = arith.negf %12 : vector<16x64xf32>
    %14 = math.exp %13 : vector<16x64xf32>
    %cst_12 = arith.constant 1.000000e+00 : f32
    %15 = vector.broadcast %cst_12 : f32 to vector<16x64xf32>
    %16 = arith.addf %15, %14 : vector<16x64xf32>
    %17 = arith.divf %15, %16 : vector<16x64xf32>
    %18 = vector.extract_strided_slice %11 {offsets = [0, 128], sizes = [16, 64], strides = [1, 1]} : vector<16x256xf32> to vector<16x64xf32>
    %19 = arith.negf %18 : vector<16x64xf32>
    %20 = math.exp %19 : vector<16x64xf32>
    %cst_13 = arith.constant 1.000000e+00 : f32
    %21 = vector.broadcast %cst_13 : f32 to vector<16x64xf32>
    %22 = arith.addf %21, %20 : vector<16x64xf32>
    %23 = arith.divf %21, %22 : vector<16x64xf32>
    %24 = vector.extract_strided_slice %11 {offsets = [0, 192], sizes = [16, 64], strides = [1, 1]} : vector<16x256xf32> to vector<16x64xf32>
    %25 = math.tanh %24 : vector<16x64xf32>
    %26 = arith.mulf %17, %25 : vector<16x64xf32>
    %27 = math.tanh %26 : vector<16x64xf32>
    %28 = arith.mulf %23, %27 : vector<16x64xf32>
    %c16 = arith.constant 16 : index
    %c0_14 = arith.constant 0 : index
    %29 = vector.load %arg8[%c16, %c0_14] : memref<128x256xbf16, #tpu.memory_space<vmem>>, vector<16x256xbf16>
    %30 = arith.extf %29 : vector<16x256xbf16> to vector<16x256xf32>
    %31 = arith.truncf %28 : vector<16x64xf32> to vector<16x64xbf16>
    %cst_15 = arith.constant dense<0.000000e+00> : vector<16x256xf32>
    %32 = tpu.matmul %31, %9, %cst_15 {dimension_numbers = #tpu.dot_dimension_numbers<[1], [0], [0], [1], [0, 0, 1, 1], [], []>} : vector<16x64xbf16>, vector<64x256xbf16>, vector<16x256xf32> -> vector<16x256xf32>
    %33 = arith.addf %30, %32 : vector<16x256xf32>
    %34 = vector.extract_strided_slice %33 {offsets = [0, 0], sizes = [16, 192], strides = [1, 1]} : vector<16x256xf32> to vector<16x192xf32>
    %35 = arith.negf %34 : vector<16x192xf32>
    %36 = math.exp %35 : vector<16x192xf32>
    %cst_16 = arith.constant 1.000000e+00 : f32
    %37 = vector.broadcast %cst_16 : f32 to vector<16x192xf32>
    %38 = arith.addf %37, %36 : vector<16x192xf32>
    %39 = arith.divf %37, %38 : vector<16x192xf32>
    %40 = vector.extract_strided_slice %33 {offsets = [0, 192], sizes = [16, 64], strides = [1, 1]} : vector<16x256xf32> to vector<16x64xf32>
    %41 = math.tanh %40 : vector<16x64xf32>
    %42 = vector.extract_strided_slice %39 {offsets = [0, 0], sizes = [16, 64], strides = [1, 1]} : vector<16x192xf32> to vector<16x64xf32>
    %43 = vector.extract_strided_slice %39 {offsets = [0, 64], sizes = [16, 64], strides = [1, 1]} : vector<16x192xf32> to vector<16x64xf32>
    %44 = vector.extract_strided_slice %39 {offsets = [0, 128], sizes = [16, 64], strides = [1, 1]} : vector<16x192xf32> to vector<16x64xf32>
    %45 = arith.mulf %43, %26 : vector<16x64xf32>
    %46 = arith.mulf %42, %41 : vector<16x64xf32>
    %47 = arith.addf %45, %46 : vector<16x64xf32>
    %48 = math.tanh %47 : vector<16x64xf32>
    %49 = arith.mulf %44, %48 : vector<16x64xf32>
    %c32 = arith.constant 32 : index
    %c0_17 = arith.constant 0 : index
    %50 = vector.load %arg8[%c32, %c0_17] : memref<128x256xbf16, #tpu.memory_space<vmem>>, vector<16x256xbf16>
    %51 = arith.extf %50 : vector<16x256xbf16> to vector<16x256xf32>
    %52 = arith.truncf %49 : vector<16x64xf32> to vector<16x64xbf16>
    %cst_18 = arith.constant dense<0.000000e+00> : vector<16x256xf32>
    %53 = tpu.matmul %52, %9, %cst_18 {dimension_numbers = #tpu.dot_dimension_numbers<[1], [0], [0], [1], [0, 0, 1, 1], [], []>} : vector<16x64xbf16>, vector<64x256xbf16>, vector<16x256xf32> -> vector<16x256xf32>
    %54 = arith.addf %51, %53 : vector<16x256xf32>
    %55 = vector.extract_strided_slice %54 {offsets = [0, 0], sizes = [16, 192], strides = [1, 1]} : vector<16x256xf32> to vector<16x192xf32>
    %56 = arith.negf %55 : vector<16x192xf32>
    %57 = math.exp %56 : vector<16x192xf32>
    %cst_19 = arith.constant 1.000000e+00 : f32
    %58 = vector.broadcast %cst_19 : f32 to vector<16x192xf32>
    %59 = arith.addf %58, %57 : vector<16x192xf32>
    %60 = arith.divf %58, %59 : vector<16x192xf32>
    %61 = vector.extract_strided_slice %54 {offsets = [0, 192], sizes = [16, 64], strides = [1, 1]} : vector<16x256xf32> to vector<16x64xf32>
    %62 = math.tanh %61 : vector<16x64xf32>
    %63 = vector.extract_strided_slice %60 {offsets = [0, 0], sizes = [16, 64], strides = [1, 1]} : vector<16x192xf32> to vector<16x64xf32>
    %64 = vector.extract_strided_slice %60 {offsets = [0, 64], sizes = [16, 64], strides = [1, 1]} : vector<16x192xf32> to vector<16x64xf32>
    %65 = vector.extract_strided_slice %60 {offsets = [0, 128], sizes = [16, 64], strides = [1, 1]} : vector<16x192xf32> to vector<16x64xf32>
    %66 = arith.mulf %64, %47 : vector<16x64xf32>
    %67 = arith.mulf %63, %62 : vector<16x64xf32>
    %68 = arith.addf %66, %67 : vector<16x64xf32>
    %69 = math.tanh %68 : vector<16x64xf32>
    %70 = arith.mulf %65, %69 : vector<16x64xf32>
    %c48 = arith.constant 48 : index
    %c0_20 = arith.constant 0 : index
    %71 = vector.load %arg8[%c48, %c0_20] : memref<128x256xbf16, #tpu.memory_space<vmem>>, vector<16x256xbf16>
    %72 = arith.extf %71 : vector<16x256xbf16> to vector<16x256xf32>
    %73 = arith.truncf %70 : vector<16x64xf32> to vector<16x64xbf16>
    %cst_21 = arith.constant dense<0.000000e+00> : vector<16x256xf32>
    %74 = tpu.matmul %73, %9, %cst_21 {dimension_numbers = #tpu.dot_dimension_numbers<[1], [0], [0], [1], [0, 0, 1, 1], [], []>} : vector<16x64xbf16>, vector<64x256xbf16>, vector<16x256xf32> -> vector<16x256xf32>
    %75 = arith.addf %72, %74 : vector<16x256xf32>
    %76 = vector.extract_strided_slice %75 {offsets = [0, 0], sizes = [16, 192], strides = [1, 1]} : vector<16x256xf32> to vector<16x192xf32>
    %77 = arith.negf %76 : vector<16x192xf32>
    %78 = math.exp %77 : vector<16x192xf32>
    %cst_22 = arith.constant 1.000000e+00 : f32
    %79 = vector.broadcast %cst_22 : f32 to vector<16x192xf32>
    %80 = arith.addf %79, %78 : vector<16x192xf32>
    %81 = arith.divf %79, %80 : vector<16x192xf32>
    %82 = vector.extract_strided_slice %75 {offsets = [0, 192], sizes = [16, 64], strides = [1, 1]} : vector<16x256xf32> to vector<16x64xf32>
    %83 = math.tanh %82 : vector<16x64xf32>
    %84 = vector.extract_strided_slice %81 {offsets = [0, 0], sizes = [16, 64], strides = [1, 1]} : vector<16x192xf32> to vector<16x64xf32>
    %85 = vector.extract_strided_slice %81 {offsets = [0, 64], sizes = [16, 64], strides = [1, 1]} : vector<16x192xf32> to vector<16x64xf32>
    %86 = vector.extract_strided_slice %81 {offsets = [0, 128], sizes = [16, 64], strides = [1, 1]} : vector<16x192xf32> to vector<16x64xf32>
    %87 = arith.mulf %85, %68 : vector<16x64xf32>
    %88 = arith.mulf %84, %83 : vector<16x64xf32>
    %89 = arith.addf %87, %88 : vector<16x64xf32>
    %90 = math.tanh %89 : vector<16x64xf32>
    %91 = arith.mulf %86, %90 : vector<16x64xf32>
    %c64 = arith.constant 64 : index
    %c0_23 = arith.constant 0 : index
    %92 = vector.load %arg8[%c64, %c0_23] : memref<128x256xbf16, #tpu.memory_space<vmem>>, vector<16x256xbf16>
    %93 = arith.extf %92 : vector<16x256xbf16> to vector<16x256xf32>
    %94 = arith.truncf %91 : vector<16x64xf32> to vector<16x64xbf16>
    %cst_24 = arith.constant dense<0.000000e+00> : vector<16x256xf32>
    %95 = tpu.matmul %94, %9, %cst_24 {dimension_numbers = #tpu.dot_dimension_numbers<[1], [0], [0], [1], [0, 0, 1, 1], [], []>} : vector<16x64xbf16>, vector<64x256xbf16>, vector<16x256xf32> -> vector<16x256xf32>
    %96 = arith.addf %93, %95 : vector<16x256xf32>
    %97 = vector.extract_strided_slice %96 {offsets = [0, 0], sizes = [16, 192], strides = [1, 1]} : vector<16x256xf32> to vector<16x192xf32>
    %98 = arith.negf %97 : vector<16x192xf32>
    %99 = math.exp %98 : vector<16x192xf32>
    %cst_25 = arith.constant 1.000000e+00 : f32
    %100 = vector.broadcast %cst_25 : f32 to vector<16x192xf32>
    %101 = arith.addf %100, %99 : vector<16x192xf32>
    %102 = arith.divf %100, %101 : vector<16x192xf32>
    %103 = vector.extract_strided_slice %96 {offsets = [0, 192], sizes = [16, 64], strides = [1, 1]} : vector<16x256xf32> to vector<16x64xf32>
    %104 = math.tanh %103 : vector<16x64xf32>
    %105 = vector.extract_strided_slice %102 {offsets = [0, 0], sizes = [16, 64], strides = [1, 1]} : vector<16x192xf32> to vector<16x64xf32>
    %106 = vector.extract_strided_slice %102 {offsets = [0, 64], sizes = [16, 64], strides = [1, 1]} : vector<16x192xf32> to vector<16x64xf32>
    %107 = vector.extract_strided_slice %102 {offsets = [0, 128], sizes = [16, 64], strides = [1, 1]} : vector<16x192xf32> to vector<16x64xf32>
    %108 = arith.mulf %106, %89 : vector<16x64xf32>
    %109 = arith.mulf %105, %104 : vector<16x64xf32>
    %110 = arith.addf %108, %109 : vector<16x64xf32>
    %111 = math.tanh %110 : vector<16x64xf32>
    %112 = arith.mulf %107, %111 : vector<16x64xf32>
    %c80 = arith.constant 80 : index
    %c0_26 = arith.constant 0 : index
    %113 = vector.load %arg8[%c80, %c0_26] : memref<128x256xbf16, #tpu.memory_space<vmem>>, vector<16x256xbf16>
    %114 = arith.extf %113 : vector<16x256xbf16> to vector<16x256xf32>
    %115 = arith.truncf %112 : vector<16x64xf32> to vector<16x64xbf16>
    %cst_27 = arith.constant dense<0.000000e+00> : vector<16x256xf32>
    %116 = tpu.matmul %115, %9, %cst_27 {dimension_numbers = #tpu.dot_dimension_numbers<[1], [0], [0], [1], [0, 0, 1, 1], [], []>} : vector<16x64xbf16>, vector<64x256xbf16>, vector<16x256xf32> -> vector<16x256xf32>
    %117 = arith.addf %114, %116 : vector<16x256xf32>
    %118 = vector.extract_strided_slice %117 {offsets = [0, 0], sizes = [16, 192], strides = [1, 1]} : vector<16x256xf32> to vector<16x192xf32>
    %119 = arith.negf %118 : vector<16x192xf32>
    %120 = math.exp %119 : vector<16x192xf32>
    %cst_28 = arith.constant 1.000000e+00 : f32
    %121 = vector.broadcast %cst_28 : f32 to vector<16x192xf32>
    %122 = arith.addf %121, %120 : vector<16x192xf32>
    %123 = arith.divf %121, %122 : vector<16x192xf32>
    %124 = vector.extract_strided_slice %117 {offsets = [0, 192], sizes = [16, 64], strides = [1, 1]} : vector<16x256xf32> to vector<16x64xf32>
    %125 = math.tanh %124 : vector<16x64xf32>
    %126 = vector.extract_strided_slice %123 {offsets = [0, 0], sizes = [16, 64], strides = [1, 1]} : vector<16x192xf32> to vector<16x64xf32>
    %127 = vector.extract_strided_slice %123 {offsets = [0, 64], sizes = [16, 64], strides = [1, 1]} : vector<16x192xf32> to vector<16x64xf32>
    %128 = vector.extract_strided_slice %123 {offsets = [0, 128], sizes = [16, 64], strides = [1, 1]} : vector<16x192xf32> to vector<16x64xf32>
    %129 = arith.mulf %127, %110 : vector<16x64xf32>
    %130 = arith.mulf %126, %125 : vector<16x64xf32>
    %131 = arith.addf %129, %130 : vector<16x64xf32>
    %132 = math.tanh %131 : vector<16x64xf32>
    %133 = arith.mulf %128, %132 : vector<16x64xf32>
    %c96 = arith.constant 96 : index
    %c0_29 = arith.constant 0 : index
    %134 = vector.load %arg8[%c96, %c0_29] : memref<128x256xbf16, #tpu.memory_space<vmem>>, vector<16x256xbf16>
    %135 = arith.extf %134 : vector<16x256xbf16> to vector<16x256xf32>
    %136 = arith.truncf %133 : vector<16x64xf32> to vector<16x64xbf16>
    %cst_30 = arith.constant dense<0.000000e+00> : vector<16x256xf32>
    %137 = tpu.matmul %136, %9, %cst_30 {dimension_numbers = #tpu.dot_dimension_numbers<[1], [0], [0], [1], [0, 0, 1, 1], [], []>} : vector<16x64xbf16>, vector<64x256xbf16>, vector<16x256xf32> -> vector<16x256xf32>
    %138 = arith.addf %135, %137 : vector<16x256xf32>
    %139 = vector.extract_strided_slice %138 {offsets = [0, 0], sizes = [16, 192], strides = [1, 1]} : vector<16x256xf32> to vector<16x192xf32>
    %140 = arith.negf %139 : vector<16x192xf32>
    %141 = math.exp %140 : vector<16x192xf32>
    %cst_31 = arith.constant 1.000000e+00 : f32
    %142 = vector.broadcast %cst_31 : f32 to vector<16x192xf32>
    %143 = arith.addf %142, %141 : vector<16x192xf32>
    %144 = arith.divf %142, %143 : vector<16x192xf32>
    %145 = vector.extract_strided_slice %138 {offsets = [0, 192], sizes = [16, 64], strides = [1, 1]} : vector<16x256xf32> to vector<16x64xf32>
    %146 = math.tanh %145 : vector<16x64xf32>
    %147 = vector.extract_strided_slice %144 {offsets = [0, 0], sizes = [16, 64], strides = [1, 1]} : vector<16x192xf32> to vector<16x64xf32>
    %148 = vector.extract_strided_slice %144 {offsets = [0, 64], sizes = [16, 64], strides = [1, 1]} : vector<16x192xf32> to vector<16x64xf32>
    %149 = vector.extract_strided_slice %144 {offsets = [0, 128], sizes = [16, 64], strides = [1, 1]} : vector<16x192xf32> to vector<16x64xf32>
    %150 = arith.mulf %148, %131 : vector<16x64xf32>
    %151 = arith.mulf %147, %146 : vector<16x64xf32>
    %152 = arith.addf %150, %151 : vector<16x64xf32>
    %153 = math.tanh %152 : vector<16x64xf32>
    %154 = arith.mulf %149, %153 : vector<16x64xf32>
    %c112 = arith.constant 112 : index
    %c0_32 = arith.constant 0 : index
    %155 = vector.load %arg8[%c112, %c0_32] : memref<128x256xbf16, #tpu.memory_space<vmem>>, vector<16x256xbf16>
    %156 = arith.extf %155 : vector<16x256xbf16> to vector<16x256xf32>
    %157 = arith.truncf %154 : vector<16x64xf32> to vector<16x64xbf16>
    %cst_33 = arith.constant dense<0.000000e+00> : vector<16x256xf32>
    %158 = tpu.matmul %157, %9, %cst_33 {dimension_numbers = #tpu.dot_dimension_numbers<[1], [0], [0], [1], [0, 0, 1, 1], [], []>} : vector<16x64xbf16>, vector<64x256xbf16>, vector<16x256xf32> -> vector<16x256xf32>
    %159 = arith.addf %156, %158 : vector<16x256xf32>
    %160 = vector.extract_strided_slice %159 {offsets = [0, 0], sizes = [16, 192], strides = [1, 1]} : vector<16x256xf32> to vector<16x192xf32>
    %161 = arith.negf %160 : vector<16x192xf32>
    %162 = math.exp %161 : vector<16x192xf32>
    %cst_34 = arith.constant 1.000000e+00 : f32
    %163 = vector.broadcast %cst_34 : f32 to vector<16x192xf32>
    %164 = arith.addf %163, %162 : vector<16x192xf32>
    %165 = arith.divf %163, %164 : vector<16x192xf32>
    %166 = vector.extract_strided_slice %159 {offsets = [0, 192], sizes = [16, 64], strides = [1, 1]} : vector<16x256xf32> to vector<16x64xf32>
    %167 = math.tanh %166 : vector<16x64xf32>
    %168 = vector.extract_strided_slice %165 {offsets = [0, 0], sizes = [16, 64], strides = [1, 1]} : vector<16x192xf32> to vector<16x64xf32>
    %169 = vector.extract_strided_slice %165 {offsets = [0, 64], sizes = [16, 64], strides = [1, 1]} : vector<16x192xf32> to vector<16x64xf32>
    %170 = vector.extract_strided_slice %165 {offsets = [0, 128], sizes = [16, 64], strides = [1, 1]} : vector<16x192xf32> to vector<16x64xf32>
    %171 = arith.mulf %169, %152 : vector<16x64xf32>
    %172 = arith.mulf %168, %167 : vector<16x64xf32>
    %173 = arith.addf %171, %172 : vector<16x64xf32>
    %174 = math.tanh %173 : vector<16x64xf32>
    %175 = arith.mulf %170, %174 : vector<16x64xf32>
    %176 = arith.truncf %175 : vector<16x64xf32> to vector<16x64xbf16>
    %c0_35 = arith.constant 0 : index
    %c0_36 = arith.constant 0 : index
    %177 = vector.load %arg5[%c0_35, %c0_36] : memref<64x128xbf16, #tpu.memory_space<vmem>>, vector<64x128xbf16>
    %cst_37 = arith.constant dense<0.000000e+00> : vector<16x128xf32>
    %178 = tpu.matmul %176, %177, %cst_37 {dimension_numbers = #tpu.dot_dimension_numbers<[1], [0], [0], [1], [0, 0, 1, 1], [], []>} : vector<16x64xbf16>, vector<64x128xbf16>, vector<16x128xf32> -> vector<16x128xf32>
    %c0_38 = arith.constant 0 : index
    %c0_39 = arith.constant 0 : index
    %179 = vector.load %arg6[%c0_38, %c0_39] : memref<1x128xf32, #tpu.memory_space<vmem>>, vector<1x128xf32>
    %180 = vector.broadcast %179 : vector<1x128xf32> to vector<16x128xf32>
    %181 = arith.addf %178, %180 : vector<16x128xf32>
    %c0_40 = arith.constant 0 : index
    %c0_41 = arith.constant 0 : index
    %182 = vector.load %arg7[%c0_40, %c0_41] : memref<16x128xf32, #tpu.memory_space<vmem>>, vector<16x128xf32>
    tpu.vector_store %arg7[%c0_40, %c0_41], %181 {strides = array<i32>} : memref<16x128xf32, #tpu.memory_space<vmem>>, vector<16x128xf32>,
    return
  }
  func.func @transform_0(%arg0: i32) -> (i32, i32, i32) {
    %c0_i32 = arith.constant 0 : i32
    %c0_i32_0 = arith.constant 0 : i32
    %c0_i32_1 = arith.constant 0 : i32
    return %c0_i32, %arg0, %c0_i32_0 : i32, i32, i32
  }
  func.func @transform_1(%arg0: i32) -> (i32, i32) {
    %c0_i32 = arith.constant 0 : i32
    %c0_i32_0 = arith.constant 0 : i32
    %c0_i32_1 = arith.constant 0 : i32
    return %c0_i32, %c0_i32_0 : i32, i32
  }
  func.func @transform_2(%arg0: i32) -> (i32, i32) {
    %c0_i32 = arith.constant 0 : i32
    %c0_i32_0 = arith.constant 0 : i32
    %c0_i32_1 = arith.constant 0 : i32
    return %c0_i32, %c0_i32_0 : i32, i32
  }
  func.func @transform_3(%arg0: i32) -> (i32, i32) {
    %c0_i32 = arith.constant 0 : i32
    %c0_i32_0 = arith.constant 0 : i32
    %c0_i32_1 = arith.constant 0 : i32
    return %c0_i32, %c0_i32_0 : i32, i32
  }
  func.func @transform_4(%arg0: i32) -> (i32, i32) {
    %c0_i32 = arith.constant 0 : i32
    %c0_i32_0 = arith.constant 0 : i32
    %c0_i32_1 = arith.constant 0 : i32
    return %c0_i32, %c0_i32_0 : i32, i32
  }
  func.func @transform_5(%arg0: i32) -> (i32, i32) {
    %c0_i32 = arith.constant 0 : i32
    %c0_i32_0 = arith.constant 0 : i32
    %c0_i32_1 = arith.constant 0 : i32
    return %c0_i32, %c0_i32_0 : i32, i32
  }
  func.func @transform_6(%arg0: i32) -> (i32, i32) {
    %c0_i32 = arith.constant 0 : i32
    %c0_i32_0 = arith.constant 0 : i32
    return %arg0, %c0_i32 : i32, i32
  }
}

</mosaic_0001>

<llo_original>
// kernel: rnn_classifier_fwd.1
$region0: #{rnn_classifier_fwd.1}
  #allocation0 [shape = 'u32[]', space=smem, size = 0x4, offset = 0x4, fixed_abs, tag = 'smem constant byte address 0x4 - core index']
  #allocation1 [shape = 'u32[144,128]{1,0:T(1,128)}', space=vmem, size = 0x12000, scoped, tag = 'internal scratch']
  #allocation2 [shape = 'bf16[128,256]{1,0:T(8,128)(2,1)}', space=vmem, size = 0x10000, scoped, tag = 'scratch operand']
  %s0 = inlined_call_operand.vmem [shape: bf16[8,16,32], index: 0, kind: input, shape index: {}]
  %s1 = inlined_call_operand.vmem [shape: bf16[32,256], index: 1, kind: input, shape index: {}]
  %s2 = inlined_call_operand.vmem [shape: bf16[64,256], index: 2, kind: input, shape index: {}]
  %s3 = inlined_call_operand.vmem [shape: f32[1,256], index: 3, kind: input, shape index: {}]
  %s4 = inlined_call_operand.hbm [shape: bf16[64,128], index: 4, kind: input, shape index: {}]
  %s5 = inlined_call_operand.vmem [shape: f32[1,128], index: 5, kind: input, shape index: {}]
  %s6 = inlined_call_operand.vmem [shape: f32[16,128], index: 6, kind: output, shape index: {}]
  %s7 = sld [smem:[#allocation0]]
  $region38: #{rnn_classifier_fwd.1} parent=0
    _
  %s9 = ssub.s32 1, %s7
  %s10 = scalar_select 0, %s9, %s7
  $region1: #{rnn_classifier_fwd.1} parent=0
    #allocation3 [shape = 'u8[16384]{0}', space=vmem, size = 0x4000, scoped, tag = 'input window, operand 4, single buffered']
    #allocation4 [shape = 's32[1]{0}', space=sflag, size = 0x4, scoped, tag = 'scoped memory for rnn_classifier_fwd.1']
    %11 = vsyncpa [#allocation4], 0
    // Predicated region
    $region2: #{rnn_classifier_fwd.1} parent=1 // pred_check
      _
    $region3: #{rnn_classifier_fwd.1} parent=1 // pred_check_branch
      %13 = sbr.rel (0) target = $region5
    $region4: #{rnn_classifier_fwd.1} parent=1 // pred_region
      _
    $region5: #{rnn_classifier_fwd.1} parent=1 // pred_fallthru
      _
    // Predicated region
    $region6: #{rnn_classifier_fwd.1} parent=1 // pred_check
      _
    $region7: #{rnn_classifier_fwd.1} parent=1 // pred_check_branch
      %15 = sbr.rel (0) target = $region9
    $region8: #{rnn_classifier_fwd.1} parent=1 // pred_region
      _
    $region9: #{rnn_classifier_fwd.1} parent=1 // pred_fallthru
      _
    // Predicated region
    $region10: #{rnn_classifier_fwd.1} parent=1 // pred_check
      _
    $region11: #{rnn_classifier_fwd.1} parent=1 // pred_check_branch
      %17 = sbr.rel (0) target = $region13
    $region12: #{rnn_classifier_fwd.1} parent=1 // pred_region
      _
    $region13: #{rnn_classifier_fwd.1} parent=1 // pred_fallthru
      _
    // Predicated region
    $region14: #{rnn_classifier_fwd.1} parent=1 // pred_check
      _
    $region15: #{rnn_classifier_fwd.1} parent=1 // pred_check_branch
      %19 = sbr.rel (0) target = $region17
    $region16: #{rnn_classifier_fwd.1} parent=1 // pred_region
      _
    $region17: #{rnn_classifier_fwd.1} parent=1 // pred_fallthru
      _
    // Predicated region
    $region18: #{rnn_classifier_fwd.1} parent=1 // pred_check
      _
    $region19: #{rnn_classifier_fwd.1} parent=1 // pred_check_branch
      %21 = sbr.rel (0) target = $region21
    $region20: #{rnn_classifier_fwd.1} parent=1 // pred_region
      %s23 = ssub.s32 512, 512
      %24 = vsyncadd [#allocation4], %s23
      %s25 = sshll.u32 [#allocation3], 4
      %s26 = int_to_ptr.vmem [resolvable:$true] %s25
      %31 = dma.hbm_to_vmem [thread:$0]  %s4, 512, %s26, [#allocation4], 64, 64, 4
    $region21: #{rnn_classifier_fwd.1} parent=1 // pred_fallthru
      _
    // Predicated region
    $region22: #{rnn_classifier_fwd.1} parent=1 // pred_check
      _
    $region23: #{rnn_classifier_fwd.1} parent=1 // pred_check_branch
      %33 = sbr.rel (0) target = $region25
    $region24: #{rnn_classifier_fwd.1} parent=1 // pred_region
      _
    $region25: #{rnn_classifier_fwd.1} parent=1 // pred_fallthru
      _
    // Predicated region
    $region26: #{rnn_classifier_fwd.1} parent=1 // pred_check
      _
    $region27: #{rnn_classifier_fwd.1} parent=1 // pred_check_branch
      %35 = sbr.rel (0) target = $region29
    $region28: #{rnn_classifier_fwd.1} parent=1 // pred_region
      %36 = dma.done [#allocation4], 512
    $region29: #{rnn_classifier_fwd.1} parent=1 // pred_fallthru
      _
    %v38 = vld [vmem:[%s0] sm:$0xf]
    %v39 = vld [vmem:[%s0 + $0x4] sm:$0xf]
    %v40 = vld [vmem:[%s0 + $0x8] sm:$0xf]
    %v41 = vld [vmem:[%s0 + $0xc] sm:$0xf]
    %v42 = vld [vmem:[%s0 + $0x10] sm:$0xf]
    %v43 = vld [vmem:[%s0 + $0x14] sm:$0xf]
    %v44 = vld [vmem:[%s0 + $0x18] sm:$0xf]
    %v45 = vld [vmem:[%s0 + $0x1c] sm:$0xf]
    %v46 = vld [vmem:[%s0 + $0x20] sm:$0xf]
    %v47 = vld [vmem:[%s0 + $0x24] sm:$0xf]
    %v48 = vld [vmem:[%s0 + $0x28] sm:$0xf]
    %v49 = vld [vmem:[%s0 + $0x2c] sm:$0xf]
    %v50 = vld [vmem:[%s0 + $0x30] sm:$0xf]
    %v51 = vld [vmem:[%s0 + $0x34] sm:$0xf]
    %v52 = vld [vmem:[%s0 + $0x38] sm:$0xf]
    %v53 = vld [vmem:[%s0 + $0x3c] sm:$0xf]
    %v54 = vld [vmem:[%s1] sm:$0xff]
    %v55 = vld [vmem:[%s1 + $0x8] sm:$0xff]
    %v56 = vld [vmem:[%s1 + $0x10] sm:$0xff]
    %v57 = vld [vmem:[%s1 + $0x18] sm:$0xff]
    %v58 = vld [vmem:[%s3] sm:$0x3]
    %v60 = vlaneseq
    %v61 = vshrl.u32 %v60, 7
    %v62 = vsub.s32 0, %v61
    %v63 = vrot.slane %v58, %v62
    %v64 = vlaneseq
    %v65 = vshrl.u32 %v64, 7
    %v66 = vsub.s32 1, %v65
    %v67 = vrot.slane %v58, %v66
    %v86 = vunpack.c.l.b16 %v38
    %v87 = vunpack.c.l.b16 %v39
    %v88 = vunpack.c.l.b16 %v40
    %v89 = vunpack.c.l.b16 %v41
    %v90 = vunpack.c.l.b16 %v42
    %v91 = vunpack.c.l.b16 %v43
    %v92 = vunpack.c.l.b16 %v44
    %v93 = vunpack.c.l.b16 %v45
    %v94 = vunpack.c.l.b16 %v46
    %v95 = vunpack.c.l.b16 %v47
    %v96 = vunpack.c.l.b16 %v48
    %v97 = vunpack.c.l.b16 %v49
    %v98 = vunpack.c.l.b16 %v50
    %v99 = vunpack.c.l.b16 %v51
    %v100 = vunpack.c.l.b16 %v52
    %v101 = vunpack.c.l.b16 %v53
    %v102 = vpack.c.b16 %v87, %v86
    %v103 = vpack.c.b16 %v89, %v88
    %v104 = vpack.c.b16 %v91, %v90
    %v105 = vpack.c.b16 %v93, %v92
    %v106 = vpack.c.b16 %v95, %v94
    %v107 = vpack.c.b16 %v97, %v96
    %v108 = vpack.c.b16 %v99, %v98
    %v109 = vpack.c.b16 %v101, %v100
    %v114 = vunpack.c.l.b16 %v54
    %v115 = vunpack.c.h.b16 %v54
    %v116 = vunpack.c.l.b16 %v55
    %v117 = vunpack.c.h.b16 %v55
    %v118 = vunpack.c.l.b16 %v56
    %v119 = vunpack.c.h.b16 %v56
    %v120 = vunpack.c.l.b16 %v57
    %v121 = vunpack.c.h.b16 %v57
    %v122 = vpack.c.b16 %v116, %v114
    %v123 = vpack.c.b16 %v117, %v115
    %v124 = vpack.c.b16 %v120, %v118
    %v125 = vpack.c.b16 %v121, %v119
    %vm130 = vcmask 261120
    %v132 = vsel %vm130, %v102, 0
    %v135 = vsel %vm130, %v103, 0
    %v138 = vsel %vm130, %v104, 0
    %v141 = vsel %vm130, %v105, 0
    %v144 = vsel %vm130, %v106, 0
    %v147 = vsel %vm130, %v107, 0
    %v150 = vsel %vm130, %v108, 0
    %v153 = vsel %vm130, %v109, 0
    %155 = vmatprep.subr.bf16.mxu0 0
    %156 = vmatpush1.bf16.msra.mxu0 0
    %157 = vmatprep.subr.bf16.mxu0 0
    %158 = vmatpush1.bf16.msra.mxu0 0
    %159 = vmatprep.subr.bf16.mxu0 0
    %160 = vmatpush1.bf16.msra.mxu0 0
    %161 = vmatprep.subr.bf16.mxu0 0
    %162 = vmatpush1.bf16.msra.mxu0 0
    %163 = vmatprep.subr.bf16.mxu0 0
    %164 = vmatpush1.bf16.msra.mxu0 0
    %165 = vmatprep.subr.bf16.mxu0 0
    %166 = vmatpush1.bf16.msra.mxu0 0
    %167 = vmatprep.subr.bf16.mxu0 %v125
    %168 = vmatpush1.bf16.msra.mxu0 %v124
    %169 = vmatprep.subr.bf16.mxu0 %v123
    %170 = vmatpush1.bf16.msra.mxu0 %v122
    %171 = vmatprep.subr.bf16.mxu0 0
    %172 = vmatpush2.bf16.msra.mxu0 0
    %173 = vmatprep.subr.bf16.mxu0 0
    %174 = vmatpush2.bf16.msra.mxu0 0
    %175 = vmatprep.subr.bf16.mxu0 0
    %176 = vmatpush2.bf16.msra.mxu0 0
    %177 = vmatprep.subr.bf16.mxu0 0
    %178 = vmatpush2.bf16.msra.mxu0 0
    %179 = vmatprep.subr.bf16.mxu0 0
    %180 = vmatpush2.bf16.msra.mxu0 0
    %181 = vmatprep.subr.bf16.mxu0 0
    %182 = vmatpush2.bf16.msra.mxu0 0
    %183 = vmatprep.subr.bf16.mxu0 0
    %184 = vmatpush2.bf16.msra.mxu0 0
    %185 = vmatprep.subr.bf16.mxu0 0
    %186 = vmatpush2.bf16.msra.mxu0 0
    %187 = vmatprep.mubr.bf16.mxu0 0
    %188 = vmatmul.mubr.bf16.gmra.mxu0 %v132
    %v189 = vpop.f32.mrf.mxu0
    %v190 = vadd.f32 %v63, %v189
    %v191 = vpop.f32.mrf.mxu0
    %v192 = vadd.f32 %v67, %v191
    %v193 = vpop.f32.mrf.mxu0
    %v194 = vadd.f32 %v63, %v193
    %v195 = vpop.f32.mrf.mxu0
    %v196 = vadd.f32 %v67, %v195
    %197 = vmatprep.mubr.bf16.mxu0 0
    %198 = vmatmul.mubr.bf16.gmra.mxu0 %v135
    %v199 = vpop.f32.mrf.mxu0
    %v200 = vadd.f32 %v63, %v199
    %v201 = vpop.f32.mrf.mxu0
    %v202 = vadd.f32 %v67, %v201
    %v203 = vpop.f32.mrf.mxu0
    %v204 = vadd.f32 %v63, %v203
    %v205 = vpop.f32.mrf.mxu0
    %v206 = vadd.f32 %v67, %v205
    %207 = vmatprep.mubr.bf16.mxu0 0
    %208 = vmatmul.mubr.bf16.gmra.mxu0 %v138
    %v209 = vpop.f32.mrf.mxu0
    %v210 = vadd.f32 %v63, %v209
    %v211 = vpop.f32.mrf.mxu0
    %v212 = vadd.f32 %v67, %v211
    %v213 = vpop.f32.mrf.mxu0
    %v214 = vadd.f32 %v63, %v213
    %v215 = vpop.f32.mrf.mxu0
    %v216 = vadd.f32 %v67, %v215
    %217 = vmatprep.mubr.bf16.mxu0 0
    %218 = vmatmul.mubr.bf16.gmra.mxu0 %v141
    %v219 = vpop.f32.mrf.mxu0
    %v220 = vadd.f32 %v63, %v219
    %v221 = vpop.f32.mrf.mxu0
    %v222 = vadd.f32 %v67, %v221
    %v223 = vpop.f32.mrf.mxu0
    %v224 = vadd.f32 %v63, %v223
    %v225 = vpop.f32.mrf.mxu0
    %v226 = vadd.f32 %v67, %v225
    %227 = vmatprep.mubr.bf16.mxu0 0
    %228 = vmatmul.mubr.bf16.gmra.mxu0 %v144
    %v229 = vpop.f32.mrf.mxu0
    %v230 = vadd.f32 %v63, %v229
    %v231 = vpop.f32.mrf.mxu0
    %v232 = vadd.f32 %v67, %v231
    %v233 = vpop.f32.mrf.mxu0
    %v234 = vadd.f32 %v63, %v233
    %v235 = vpop.f32.mrf.mxu0
    %v236 = vadd.f32 %v67, %v235
    %237 = vmatprep.mubr.bf16.mxu0 0
    %238 = vmatmul.mubr.bf16.gmra.mxu0 %v147
    %v239 = vpop.f32.mrf.mxu0
    %v240 = vadd.f32 %v63, %v239
    %v241 = vpop.f32.mrf.mxu0
    %v242 = vadd.f32 %v67, %v241
    %v243 = vpop.f32.mrf.mxu0
    %v244 = vadd.f32 %v63, %v243
    %v245 = vpop.f32.mrf.mxu0
    %v246 = vadd.f32 %v67, %v245
    %247 = vmatprep.mubr.bf16.mxu0 0
    %248 = vmatmul.mubr.bf16.gmra.mxu0 %v150
    %v249 = vpop.f32.mrf.mxu0
    %v250 = vadd.f32 %v63, %v249
    %v251 = vpop.f32.mrf.mxu0
    %v252 = vadd.f32 %v67, %v251
    %v253 = vpop.f32.mrf.mxu0
    %v254 = vadd.f32 %v63, %v253
    %v255 = vpop.f32.mrf.mxu0
    %v256 = vadd.f32 %v67, %v255
    %257 = vmatprep.mubr.bf16.mxu0 0
    %258 = vmatmul.mubr.bf16.gmra.mxu0 %v153
    %v259 = vpop.f32.mrf.mxu0
    %v260 = vadd.f32 %v63, %v259
    %v261 = vpop.f32.mrf.mxu0
    %v262 = vadd.f32 %v67, %v261
    %v263 = vpop.f32.mrf.mxu0
    %v264 = vadd.f32 %v63, %v263
    %v265 = vpop.f32.mrf.mxu0
    %v266 = vadd.f32 %v67, %v265
    %267 = vdwg.mxu0
    %v268 = vpack.c.bf16 %v194, %v190
    %v269 = vpack.c.bf16 %v196, %v192
    %v270 = vpack.c.bf16 %v204, %v200
    %v271 = vpack.c.bf16 %v206, %v202
    %v272 = vpack.c.bf16 %v214, %v210
    %v273 = vpack.c.bf16 %v216, %v212
    %v274 = vpack.c.bf16 %v224, %v220
    %v275 = vpack.c.bf16 %v226, %v222
    %v276 = vpack.c.bf16 %v234, %v230
    %v277 = vpack.c.bf16 %v236, %v232
    %v278 = vpack.c.bf16 %v244, %v240
    %v279 = vpack.c.bf16 %v246, %v242
    %v280 = vpack.c.bf16 %v254, %v250
    %v281 = vpack.c.bf16 %v256, %v252
    %v282 = vpack.c.bf16 %v264, %v260
    %v283 = vpack.c.bf16 %v266, %v262
    %v300 = vunpack.c.l.b16 %v268
    %v301 = vunpack.c.l.b16 %v269
    %v302 = vunpack.c.h.b16 %v268
    %v303 = vunpack.c.h.b16 %v269
    %v304 = vunpack.c.l.b16 %v270
    %v305 = vunpack.c.l.b16 %v271
    %v306 = vunpack.c.h.b16 %v270
    %v307 = vunpack.c.h.b16 %v271
    %v308 = vunpack.c.l.b16 %v272
    %v309 = vunpack.c.l.b16 %v273
    %v310 = vunpack.c.h.b16 %v272
    %v311 = vunpack.c.h.b16 %v273
    %v312 = vunpack.c.l.b16 %v274
    %v313 = vunpack.c.l.b16 %v275
    %v314 = vunpack.c.h.b16 %v274
    %v315 = vunpack.c.h.b16 %v275
    %v316 = vunpack.c.l.b16 %v276
    %v317 = vunpack.c.l.b16 %v277
    %v318 = vunpack.c.h.b16 %v276
    %v319 = vunpack.c.h.b16 %v277
    %v320 = vunpack.c.l.b16 %v278
    %v321 = vunpack.c.l.b16 %v279
    %v322 = vunpack.c.h.b16 %v278
    %v323 = vunpack.c.h.b16 %v279
    %v324 = vunpack.c.l.b16 %v280
    %v325 = vunpack.c.l.b16 %v281
    %v326 = vunpack.c.h.b16 %v280
    %v327 = vunpack.c.h.b16 %v281
    %v328 = vunpack.c.l.b16 %v282
    %v329 = vunpack.c.l.b16 %v283
    %v330 = vunpack.c.h.b16 %v282
    %v331 = vunpack.c.h.b16 %v283
    %v332 = vpack.c.b16 %v301, %v300
    %v333 = vpack.c.b16 %v303, %v302
    %v334 = vpack.c.b16 %v305, %v304
    %v335 = vpack.c.b16 %v307, %v306
    %v336 = vpack.c.b16 %v309, %v308
    %v337 = vpack.c.b16 %v311, %v310
    %v338 = vpack.c.b16 %v313, %v312
    %v339 = vpack.c.b16 %v315, %v314
    %v340 = vpack.c.b16 %v317, %v316
    %v341 = vpack.c.b16 %v319, %v318
    %v342 = vpack.c.b16 %v321, %v320
    %v343 = vpack.c.b16 %v323, %v322
    %v344 = vpack.c.b16 %v325, %v324
    %v345 = vpack.c.b16 %v327, %v326
    %v346 = vpack.c.b16 %v329, %v328
    %v347 = vpack.c.b16 %v331, %v330
    %364 = vst [vmem:[#allocation2] sm:$0xff] %v332
    %365 = vst [vmem:[#allocation2 + $0x8] sm:$0xff] %v333
    %366 = vst [vmem:[#allocation2 + $0x10] sm:$0xff] %v334
    %367 = vst [vmem:[#allocation2 + $0x18] sm:$0xff] %v335
    %368 = vst [vmem:[#allocation2 + $0x20] sm:$0xff] %v336
    %369 = vst [vmem:[#allocation2 + $0x28] sm:$0xff] %v337
    %370 = vst [vmem:[#allocation2 + $0x30] sm:$0xff] %v338
    %371 = vst [vmem:[#allocation2 + $0x38] sm:$0xff] %v339
    %372 = vst [vmem:[#allocation2 + $0x40] sm:$0xff] %v340
    %373 = vst [vmem:[#allocation2 + $0x48] sm:$0xff] %v341
    %374 = vst [vmem:[#allocation2 + $0x50] sm:$0xff] %v342
    %375 = vst [vmem:[#allocation2 + $0x58] sm:$0xff] %v343
    %376 = vst [vmem:[#allocation2 + $0x60] sm:$0xff] %v344
    %377 = vst [vmem:[#allocation2 + $0x68] sm:$0xff] %v345
    %378 = vst [vmem:[#allocation2 + $0x70] sm:$0xff] %v346
    %379 = vst [vmem:[#allocation2 + $0x78] sm:$0xff] %v347
    %v380 = vld [vmem:[%s2] sm:$0xff]
    %v381 = vld [vmem:[%s2 + $0x8] sm:$0xff]
    %v382 = vld [vmem:[%s2 + $0x10] sm:$0xff]
    %v383 = vld [vmem:[%s2 + $0x18] sm:$0xff]
    %v384 = vld [vmem:[%s2 + $0x20] sm:$0xff]
    %v385 = vld [vmem:[%s2 + $0x28] sm:$0xff]
    %v386 = vld [vmem:[%s2 + $0x30] sm:$0xff]
    %v387 = vld [vmem:[%s2 + $0x38] sm:$0xff]
    %v388 = vld [vmem:[#allocation2] sm:$0xff]
    %v389 = vld [vmem:[#allocation2 + $0x8] sm:$0xff]
    %v390 = vunpack.c.l.bf16 %v388
    %v391 = vunpack.c.h.bf16 %v388
    %v392 = vunpack.c.l.bf16 %v389
    %v393 = vunpack.c.h.bf16 %v389
    %v394 = vxor.u32 %v390, 2147483648
    %v395 = vxor.u32 %v392, 2147483648
    %v396 = vmul.f32 %v394, 1.442695
    %v397 = vpow.pop %v396
    %v398 = vmul.f32 %v395, 1.442695
    %v399 = vpow.pop %v398
    %v400 = vadd.f32 %v397, 1.0
    %v401 = vadd.f32 %v399, 1.0
    %v402 = vrcp.pop %v400
    %v403 = vmul.f32 1.0, %v402
    %v404 = vrcp.pop %v401
    %v405 = vmul.f32 1.0, %v404
    %v406 = vxor.u32 %v391, 2147483648
    %v407 = vxor.u32 %v393, 2147483648
    %v408 = vmul.f32 %v406, 1.442695
    %v409 = vpow.pop %v408
    %v410 = vmul.f32 %v407, 1.442695
    %v411 = vpow.pop %v410
    %v412 = vadd.f32 %v409, 1.0
    %v413 = vadd.f32 %v411, 1.0
    %v414 = vrcp.pop %v412
    %v415 = vmul.f32 1.0, %v414
    %v416 = vrcp.pop %v413
    %v417 = vmul.f32 1.0, %v416
    %v418 = vtanh.pop %v391
    %v419 = vtanh.pop %v393
    %422 = vrot.lane.b32.xlu0 %v418, 64
    %v423 = vpop.permute.xlu0 %422
    %424 = vrot.lane.b32.xlu0 %v419, 64
    %v425 = vpop.permute.xlu0 %424
    %v428 = vmul.f32 %v403, %v423
    %v429 = vmul.f32 %v405, %v425
    %v430 = vtanh.pop %v428
    %v431 = vtanh.pop %v429
    %v432 = vmul.f32 %v415, %v430
    %v433 = vmul.f32 %v417, %v431
    %v434 = vld [vmem:[#allocation2 + $0x10] sm:$0xff]
    %v435 = vld [vmem:[#allocation2 + $0x18] sm:$0xff]
    %v436 = vunpack.c.l.bf16 %v434
    %v437 = vunpack.c.h.bf16 %v434
    %v438 = vunpack.c.l.bf16 %v435
    %v439 = vunpack.c.h.bf16 %v435
    %v440 = vpack.c.bf16 %v433, %v432
    %v449 = vunpack.c.l.b16 %v380
    %v450 = vunpack.c.h.b16 %v380
    %v451 = vunpack.c.l.b16 %v381
    %v452 = vunpack.c.h.b16 %v381
    %v453 = vunpack.c.l.b16 %v382
    %v454 = vunpack.c.h.b16 %v382
    %v455 = vunpack.c.l.b16 %v383
    %v456 = vunpack.c.h.b16 %v383
    %v457 = vunpack.c.l.b16 %v384
    %v458 = vunpack.c.h.b16 %v384
    %v459 = vunpack.c.l.b16 %v385
    %v460 = vunpack.c.h.b16 %v385
    %v461 = vunpack.c.l.b16 %v386
    %v462 = vunpack.c.h.b16 %v386
    %v463 = vunpack.c.l.b16 %v387
    %v464 = vunpack.c.h.b16 %v387
    %v465 = vpack.c.b16 %v451, %v449
    %v466 = vpack.c.b16 %v452, %v450
    %v467 = vpack.c.b16 %v455, %v453
    %v468 = vpack.c.b16 %v456, %v454
    %v469 = vpack.c.b16 %v459, %v457
    %v470 = vpack.c.b16 %v460, %v458
    %v471 = vpack.c.b16 %v463, %v461
    %v472 = vpack.c.b16 %v464, %v462
    %vm481 = vcmask 523264
    %v483 = vsel %vm481, %v440, 0
    %485 = vmatprep.subr.bf16.mxu0 0
    %486 = vmatpush1.bf16.msra.mxu0 0
    %487 = vmatprep.subr.bf16.mxu0 0
    %488 = vmatpush1.bf16.msra.mxu0 0
    %489 = vmatprep.subr.bf16.mxu0 0
    %490 = vmatpush1.bf16.msra.mxu0 0
    %491 = vmatprep.subr.bf16.mxu0 0
    %492 = vmatpush1.bf16.msra.mxu0 0
    %493 = vmatprep.subr.bf16.mxu0 %v472
    %494 = vmatpush1.bf16.msra.mxu0 %v471
    %495 = vmatprep.subr.bf16.mxu0 %v470
    %496 = vmatpush1.bf16.msra.mxu0 %v469
    %497 = vmatprep.subr.bf16.mxu0 %v468
    %498 = vmatpush1.bf16.msra.mxu0 %v467
    %499 = vmatprep.subr.bf16.mxu0 %v466
    %500 = vmatpush1.bf16.msra.mxu0 %v465
    %501 = vmatprep.subr.bf16.mxu0 0
    %502 = vmatpush2.bf16.msra.mxu0 0
    %503 = vmatprep.subr.bf16.mxu0 0
    %504 = vmatpush2.bf16.msra.mxu0 0
    %505 = vmatprep.subr.bf16.mxu0 0
    %506 = vmatpush2.bf16.msra.mxu0 0
    %507 = vmatprep.subr.bf16.mxu0 0
    %508 = vmatpush2.bf16.msra.mxu0 0
    %509 = vmatprep.subr.bf16.mxu0 0
    %510 = vmatpush2.bf16.msra.mxu0 0
    %511 = vmatprep.subr.bf16.mxu0 0
    %512 = vmatpush2.bf16.msra.mxu0 0
    %513 = vmatprep.subr.bf16.mxu0 0
    %514 = vmatpush2.bf16.msra.mxu0 0
    %515 = vmatprep.subr.bf16.mxu0 0
    %516 = vmatpush2.bf16.msra.mxu0 0
    %517 = vmatprep.mubr.bf16.mxu0 0
    %518 = vmatmul.mubr.bf16.gmra.mxu0 %v483
    %v519 = vpop.f32.mrf.mxu0
    %v520 = vadd.f32 0.0, %v519
    %v521 = vpop.f32.mrf.mxu0
    %v522 = vadd.f32 0.0, %v521
    %v523 = vpop.f32.mrf.mxu0
    %v524 = vadd.f32 0.0, %v523
    %v525 = vpop.f32.mrf.mxu0
    %v526 = vadd.f32 0.0, %v525
    %527 = vdwg.mxu0
    %v528 = vadd.f32 %v436, %v520
    %v529 = vadd.f32 %v437, %v522
    %v530 = vadd.f32 %v438, %v524
    %v531 = vadd.f32 %v439, %v526
    %v532 = vxor.u32 %v528, 2147483648
    %v533 = vxor.u32 %v529, 2147483648
    %v534 = vxor.u32 %v530, 2147483648
    %v535 = vxor.u32 %v531, 2147483648
    %v536 = vmul.f32 %v532, 1.442695
    %v537 = vpow.pop %v536
    %v538 = vmul.f32 %v533, 1.442695
    %v539 = vpow.pop %v538
    %v540 = vmul.f32 %v534, 1.442695
    %v541 = vpow.pop %v540
    %v542 = vmul.f32 %v535, 1.442695
    %v543 = vpow.pop %v542
    %v544 = vadd.f32 %v537, 1.0
    %v545 = vadd.f32 %v539, 1.0
    %v546 = vadd.f32 %v541, 1.0
    %v547 = vadd.f32 %v543, 1.0
    %v548 = vrcp.pop %v544
    %v549 = vmul.f32 1.0, %v548
    %v550 = vrcp.pop %v545
    %v551 = vmul.f32 1.0, %v550
    %v552 = vrcp.pop %v546
    %v553 = vmul.f32 1.0, %v552
    %v554 = vrcp.pop %v547
    %v555 = vmul.f32 1.0, %v554
    %v556 = vtanh.pop %v529
    %v557 = vtanh.pop %v531
    %560 = vrot.lane.b32.xlu0 %v428, 64
    %v561 = vpop.permute.xlu0 %560
    %562 = vrot.lane.b32.xlu0 %v429, 64
    %v563 = vpop.permute.xlu0 %562
    %v566 = vmul.f32 %v549, %v561
    %v567 = vmul.f32 %v553, %v563
    %570 = vrot.lane.b32.xlu0 %v556, 64
    %v571 = vpop.permute.xlu0 %570
    %572 = vrot.lane.b32.xlu0 %v557, 64
    %v573 = vpop.permute.xlu0 %572
    %v576 = vmul.f32 %v549, %v571
    %v577 = vmul.f32 %v553, %v573
    %580 = vrot.lane.b32.xlu0 %v576, 64
    %v581 = vpop.permute.xlu0 %580
    %582 = vrot.lane.b32.xlu0 %v577, 64
    %v583 = vpop.permute.xlu0 %582
    %v586 = vadd.f32 %v566, %v581
    %v587 = vadd.f32 %v567, %v583
    %v588 = vtanh.pop %v586
    %v589 = vtanh.pop %v587
    %592 = vrot.lane.b32.xlu0 %v588, 64
    %v593 = vpop.permute.xlu0 %592
    %594 = vrot.lane.b32.xlu0 %v589, 64
    %v595 = vpop.permute.xlu0 %594
    %v598 = vmul.f32 %v551, %v593
    %v599 = vmul.f32 %v555, %v595
    %v600 = vld [vmem:[#allocation2 + $0x20] sm:$0xff]
    %v601 = vld [vmem:[#allocation2 + $0x28] sm:$0xff]
    %v602 = vunpack.c.l.bf16 %v600
    %v603 = vunpack.c.h.bf16 %v600
    %v604 = vunpack.c.l.bf16 %v601
    %v605 = vunpack.c.h.bf16 %v601
    %v606 = vpack.c.bf16 %v599, %v598
    %v608 = vsel %vm481, %v606, 0
    %610 = vmatprep.subr.bf16.mxu0 0
    %611 = vmatpush1.bf16.msra.mxu0 0
    %612 = vmatprep.subr.bf16.mxu0 0
    %613 = vmatpush1.bf16.msra.mxu0 0
    %614 = vmatprep.subr.bf16.mxu0 0
    %615 = vmatpush1.bf16.msra.mxu0 0
    %616 = vmatprep.subr.bf16.mxu0 0
    %617 = vmatpush1.bf16.msra.mxu0 0
    %618 = vmatprep.subr.bf16.mxu0 %v472
    %619 = vmatpush1.bf16.msra.mxu0 %v471
    %620 = vmatprep.subr.bf16.mxu0 %v470
    %621 = vmatpush1.bf16.msra.mxu0 %v469
    %622 = vmatprep.subr.bf16.mxu0 %v468
    %623 = vmatpush1.bf16.msra.mxu0 %v467
    %624 = vmatprep.subr.bf16.mxu0 %v466
    %625 = vmatpush1.bf16.msra.mxu0 %v465
    %626 = vmatprep.subr.bf16.mxu0 0
    %627 = vmatpush2.bf16.msra.mxu0 0
    %628 = vmatprep.subr.bf16.mxu0 0
    %629 = vmatpush2.bf16.msra.mxu0 0
    %630 = vmatprep.subr.bf16.mxu0 0
    %631 = vmatpush2.bf16.msra.mxu0 0
    %632 = vmatprep.subr.bf16.mxu0 0
    %633 = vmatpush2.bf16.msra.mxu0 0
    %634 = vmatprep.subr.bf16.mxu0 0
    %635 = vmatpush2.bf16.msra.mxu0 0
    %636 = vmatprep.subr.bf16.mxu0 0
    %637 = vmatpush2.bf16.msra.mxu0 0
    %638 = vmatprep.subr.bf16.mxu0 0
    %639 = vmatpush2.bf16.msra.mxu0 0
    %640 = vmatprep.subr.bf16.mxu0 0
    %641 = vmatpush2.bf16.msra.mxu0 0
    %642 = vmatprep.mubr.bf16.mxu0 0
    %643 = vmatmul.mubr.bf16.gmra.mxu0 %v608
    %v644 = vpop.f32.mrf.mxu0
    %v645 = vadd.f32 0.0, %v644
    %v646 = vpop.f32.mrf.mxu0
    %v647 = vadd.f32 0.0, %v646
    %v648 = vpop.f32.mrf.mxu0
    %v649 = vadd.f32 0.0, %v648
    %v650 = vpop.f32.mrf.mxu0
    %v651 = vadd.f32 0.0, %v650
    %652 = vdwg.mxu0
    %v653 = vadd.f32 %v602, %v645
    %v654 = vadd.f32 %v603, %v647
    %v655 = vadd.f32 %v604, %v649
    %v656 = vadd.f32 %v605, %v651
    %v657 = vxor.u32 %v653, 2147483648
    %v658 = vxor.u32 %v654, 2147483648
    %v659 = vxor.u32 %v655, 2147483648
    %v660 = vxor.u32 %v656, 2147483648
    %v661 = vmul.f32 %v657, 1.442695
    %v662 = vpow.pop %v661
    %v663 = vmul.f32 %v658, 1.442695
    %v664 = vpow.pop %v663
    %v665 = vmul.f32 %v659, 1.442695
    %v666 = vpow.pop %v665
    %v667 = vmul.f32 %v660, 1.442695
    %v668 = vpow.pop %v667
    %v669 = vadd.f32 %v662, 1.0
    %v670 = vadd.f32 %v664, 1.0
    %v671 = vadd.f32 %v666, 1.0
    %v672 = vadd.f32 %v668, 1.0
    %v673 = vrcp.pop %v669
    %v674 = vmul.f32 1.0, %v673
    %v675 = vrcp.pop %v670
    %v676 = vmul.f32 1.0, %v675
    %v677 = vrcp.pop %v671
    %v678 = vmul.f32 1.0, %v677
    %v679 = vrcp.pop %v672
    %v680 = vmul.f32 1.0, %v679
    %v681 = vtanh.pop %v654
    %v682 = vtanh.pop %v656
    %v683 = vmul.f32 %v674, %v586
    %v684 = vmul.f32 %v678, %v587
    %687 = vrot.lane.b32.xlu0 %v681, 64
    %v688 = vpop.permute.xlu0 %687
    %689 = vrot.lane.b32.xlu0 %v682, 64
    %v690 = vpop.permute.xlu0 %689
    %v693 = vmul.f32 %v674, %v688
    %v694 = vmul.f32 %v678, %v690
    %697 = vrot.lane.b32.xlu0 %v693, 64
    %v698 = vpop.permute.xlu0 %697
    %699 = vrot.lane.b32.xlu0 %v694, 64
    %v700 = vpop.permute.xlu0 %699
    %v703 = vadd.f32 %v683, %v698
    %v704 = vadd.f32 %v684, %v700
    %v705 = vtanh.pop %v703
    %v706 = vtanh.pop %v704
    %709 = vrot.lane.b32.xlu0 %v705, 64
    %v710 = vpop.permute.xlu0 %709
    %711 = vrot.lane.b32.xlu0 %v706, 64
    %v712 = vpop.permute.xlu0 %711
    %v715 = vmul.f32 %v676, %v710
    %v716 = vmul.f32 %v680, %v712
    %v717 = vld [vmem:[#allocation2 + $0x30] sm:$0xff]
    %v718 = vld [vmem:[#allocation2 + $0x38] sm:$0xff]
    %v719 = vunpack.c.l.bf16 %v717
    %v720 = vunpack.c.h.bf16 %v717
    %v721 = vunpack.c.l.bf16 %v718
    %v722 = vunpack.c.h.bf16 %v718
    %v723 = vpack.c.bf16 %v716, %v715
    %v725 = vsel %vm481, %v723, 0
    %727 = vmatprep.subr.bf16.mxu0 0
    %728 = vmatpush1.bf16.msra.mxu0 0
    %729 = vmatprep.subr.bf16.mxu0 0
    %730 = vmatpush1.bf16.msra.mxu0 0
    %731 = vmatprep.subr.bf16.mxu0 0
    %732 = vmatpush1.bf16.msra.mxu0 0
    %733 = vmatprep.subr.bf16.mxu0 0
    %734 = vmatpush1.bf16.msra.mxu0 0
    %735 = vmatprep.subr.bf16.mxu0 %v472
    %736 = vmatpush1.bf16.msra.mxu0 %v471
    %737 = vmatprep.subr.bf16.mxu0 %v470
    %738 = vmatpush1.bf16.msra.mxu0 %v469
    %739 = vmatprep.subr.bf16.mxu0 %v468
    %740 = vmatpush1.bf16.msra.mxu0 %v467
    %741 = vmatprep.subr.bf16.mxu0 %v466
    %742 = vmatpush1.bf16.msra.mxu0 %v465
    %743 = vmatprep.subr.bf16.mxu0 0
    %744 = vmatpush2.bf16.msra.mxu0 0
    %745 = vmatprep.subr.bf16.mxu0 0
    %746 = vmatpush2.bf16.msra.mxu0 0
    %747 = vmatprep.subr.bf16.mxu0 0
    %748 = vmatpush2.bf16.msra.mxu0 0
    %749 = vmatprep.subr.bf16.mxu0 0
    %750 = vmatpush2.bf16.msra.mxu0 0
    %751 = vmatprep.subr.bf16.mxu0 0
    %752 = vmatpush2.bf16.msra.mxu0 0
    %753 = vmatprep.subr.bf16.mxu0 0
    %754 = vmatpush2.bf16.msra.mxu0 0
    %755 = vmatprep.subr.bf16.mxu0 0
    %756 = vmatpush2.bf16.msra.mxu0 0
    %757 = vmatprep.subr.bf16.mxu0 0
    %758 = vmatpush2.bf16.msra.mxu0 0
    %759 = vmatprep.mubr.bf16.mxu0 0
    %760 = vmatmul.mubr.bf16.gmra.mxu0 %v725
    %v761 = vpop.f32.mrf.mxu0
    %v762 = vadd.f32 0.0, %v761
    %v763 = vpop.f32.mrf.mxu0
    %v764 = vadd.f32 0.0, %v763
    %v765 = vpop.f32.mrf.mxu0
    %v766 = vadd.f32 0.0, %v765
    %v767 = vpop.f32.mrf.mxu0
    %v768 = vadd.f32 0.0, %v767
    %769 = vdwg.mxu0
    %v770 = vadd.f32 %v719, %v762
    %v771 = vadd.f32 %v720, %v764
    %v772 = vadd.f32 %v721, %v766
    %v773 = vadd.f32 %v722, %v768
    %v774 = vxor.u32 %v770, 2147483648
    %v775 = vxor.u32 %v771, 2147483648
    %v776 = vxor.u32 %v772, 2147483648
    %v777 = vxor.u32 %v773, 2147483648
    %v778 = vmul.f32 %v774, 1.442695
    %v779 = vpow.pop %v778
    %v780 = vmul.f32 %v775, 1.442695
    %v781 = vpow.pop %v780
    %v782 = vmul.f32 %v776, 1.442695
    %v783 = vpow.pop %v782
    %v784 = vmul.f32 %v777, 1.442695
    %v785 = vpow.pop %v784
    %v786 = vadd.f32 %v779, 1.0
    %v787 = vadd.f32 %v781, 1.0
    %v788 = vadd.f32 %v783, 1.0
    %v789 = vadd.f32 %v785, 1.0
    %v790 = vrcp.pop %v786
    %v791 = vmul.f32 1.0, %v790
    %v792 = vrcp.pop %v787
    %v793 = vmul.f32 1.0, %v792
    %v794 = vrcp.pop %v788
    %v795 = vmul.f32 1.0, %v794
    %v796 = vrcp.pop %v789
    %v797 = vmul.f32 1.0, %v796
    %v798 = vtanh.pop %v771
    %v799 = vtanh.pop %v773
    %v800 = vmul.f32 %v791, %v703
    %v801 = vmul.f32 %v795, %v704
    %804 = vrot.lane.b32.xlu0 %v798, 64
    %v805 = vpop.permute.xlu0 %804
    %806 = vrot.lane.b32.xlu0 %v799, 64
    %v807 = vpop.permute.xlu0 %806
    %v810 = vmul.f32 %v791, %v805
    %v811 = vmul.f32 %v795, %v807
    %814 = vrot.lane.b32.xlu0 %v810, 64
    %v815 = vpop.permute.xlu0 %814
    %816 = vrot.lane.b32.xlu0 %v811, 64
    %v817 = vpop.permute.xlu0 %816
    %v820 = vadd.f32 %v800, %v815
    %v821 = vadd.f32 %v801, %v817
    %v822 = vtanh.pop %v820
    %v823 = vtanh.pop %v821
    %826 = vrot.lane.b32.xlu0 %v822, 64
    %v827 = vpop.permute.xlu0 %826
    %828 = vrot.lane.b32.xlu0 %v823, 64
    %v829 = vpop.permute.xlu0 %828
    %v832 = vmul.f32 %v793, %v827
    %v833 = vmul.f32 %v797, %v829
    %v834 = vld [vmem:[#allocation2 + $0x40] sm:$0xff]
    %v835 = vld [vmem:[#allocation2 + $0x48] sm:$0xff]
    %v836 = vunpack.c.l.bf16 %v834
    %v837 = vunpack.c.h.bf16 %v834
    %v838 = vunpack.c.l.bf16 %v835
    %v839 = vunpack.c.h.bf16 %v835
    %v840 = vpack.c.bf16 %v833, %v832
    %v842 = vsel %vm481, %v840, 0
    %844 = vmatprep.subr.bf16.mxu0 0
    %845 = vmatpush1.bf16.msra.mxu0 0
    %846 = vmatprep.subr.bf16.mxu0 0
    %847 = vmatpush1.bf16.msra.mxu0 0
    %848 = vmatprep.subr.bf16.mxu0 0
    %849 = vmatpush1.bf16.msra.mxu0 0
    %850 = vmatprep.subr.bf16.mxu0 0
    %851 = vmatpush1.bf16.msra.mxu0 0
    %852 = vmatprep.subr.bf16.mxu0 %v472
    %853 = vmatpush1.bf16.msra.mxu0 %v471
    %854 = vmatprep.subr.bf16.mxu0 %v470
    %855 = vmatpush1.bf16.msra.mxu0 %v469
    %856 = vmatprep.subr.bf16.mxu0 %v468
    %857 = vmatpush1.bf16.msra.mxu0 %v467
    %858 = vmatprep.subr.bf16.mxu0 %v466
    %859 = vmatpush1.bf16.msra.mxu0 %v465
    %860 = vmatprep.subr.bf16.mxu0 0
    %861 = vmatpush2.bf16.msra.mxu0 0
    %862 = vmatprep.subr.bf16.mxu0 0
    %863 = vmatpush2.bf16.msra.mxu0 0
    %864 = vmatprep.subr.bf16.mxu0 0
    %865 = vmatpush2.bf16.msra.mxu0 0
    %866 = vmatprep.subr.bf16.mxu0 0
    %867 = vmatpush2.bf16.msra.mxu0 0
    %868 = vmatprep.subr.bf16.mxu0 0
    %869 = vmatpush2.bf16.msra.mxu0 0
    %870 = vmatprep.subr.bf16.mxu0 0
    %871 = vmatpush2.bf16.msra.mxu0 0
    %872 = vmatprep.subr.bf16.mxu0 0
    %873 = vmatpush2.bf16.msra.mxu0 0
    %874 = vmatprep.subr.bf16.mxu0 0
    %875 = vmatpush2.bf16.msra.mxu0 0
    %876 = vmatprep.mubr.bf16.mxu0 0
    %877 = vmatmul.mubr.bf16.gmra.mxu0 %v842
    %v878 = vpop.f32.mrf.mxu0
    %v879 = vadd.f32 0.0, %v878
    %v880 = vpop.f32.mrf.mxu0
    %v881 = vadd.f32 0.0, %v880
    %v882 = vpop.f32.mrf.mxu0
    %v883 = vadd.f32 0.0, %v882
    %v884 = vpop.f32.mrf.mxu0
    %v885 = vadd.f32 0.0, %v884
    %886 = vdwg.mxu0
    %v887 = vadd.f32 %v836, %v879
    %v888 = vadd.f32 %v837, %v881
    %v889 = vadd.f32 %v838, %v883
    %v890 = vadd.f32 %v839, %v885
    %v891 = vxor.u32 %v887, 2147483648
    %v892 = vxor.u32 %v888, 2147483648
    %v893 = vxor.u32 %v889, 2147483648
    %v894 = vxor.u32 %v890, 2147483648
    %v895 = vmul.f32 %v891, 1.442695
    %v896 = vpow.pop %v895
    %v897 = vmul.f32 %v892, 1.442695
    %v898 = vpow.pop %v897
    %v899 = vmul.f32 %v893, 1.442695
    %v900 = vpow.pop %v899
    %v901 = vmul.f32 %v894, 1.442695
    %v902 = vpow.pop %v901
    %v903 = vadd.f32 %v896, 1.0
    %v904 = vadd.f32 %v898, 1.0
    %v905 = vadd.f32 %v900, 1.0
    %v906 = vadd.f32 %v902, 1.0
    %v907 = vrcp.pop %v903
    %v908 = vmul.f32 1.0, %v907
    %v909 = vrcp.pop %v904
    %v910 = vmul.f32 1.0, %v909
    %v911 = vrcp.pop %v905
    %v912 = vmul.f32 1.0, %v911
    %v913 = vrcp.pop %v906
    %v914 = vmul.f32 1.0, %v913
    %v915 = vtanh.pop %v888
    %v916 = vtanh.pop %v890
    %v917 = vmul.f32 %v908, %v820
    %v918 = vmul.f32 %v912, %v821
    %921 = vrot.lane.b32.xlu0 %v915, 64
    %v922 = vpop.permute.xlu0 %921
    %923 = vrot.lane.b32.xlu0 %v916, 64
    %v924 = vpop.permute.xlu0 %923
    %v927 = vmul.f32 %v908, %v922
    %v928 = vmul.f32 %v912, %v924
    %931 = vrot.lane.b32.xlu0 %v927, 64
    %v932 = vpop.permute.xlu0 %931
    %933 = vrot.lane.b32.xlu0 %v928, 64
    %v934 = vpop.permute.xlu0 %933
    %v937 = vadd.f32 %v917, %v932
    %v938 = vadd.f32 %v918, %v934
    %v939 = vtanh.pop %v937
    %v940 = vtanh.pop %v938
    %943 = vrot.lane.b32.xlu0 %v939, 64
    %v944 = vpop.permute.xlu0 %943
    %945 = vrot.lane.b32.xlu0 %v940, 64
    %v946 = vpop.permute.xlu0 %945
    %v949 = vmul.f32 %v910, %v944
    %v950 = vmul.f32 %v914, %v946
    %v951 = vld [vmem:[#allocation2 + $0x50] sm:$0xff]
    %v952 = vld [vmem:[#allocation2 + $0x58] sm:$0xff]
    %v953 = vunpack.c.l.bf16 %v951
    %v954 = vunpack.c.h.bf16 %v951
    %v955 = vunpack.c.l.bf16 %v952
    %v956 = vunpack.c.h.bf16 %v952
    %v957 = vpack.c.bf16 %v950, %v949
    %v959 = vsel %vm481, %v957, 0
    %961 = vmatprep.subr.bf16.mxu0 0
    %962 = vmatpush1.bf16.msra.mxu0 0
    %963 = vmatprep.subr.bf16.mxu0 0
    %964 = vmatpush1.bf16.msra.mxu0 0
    %965 = vmatprep.subr.bf16.mxu0 0
    %966 = vmatpush1.bf16.msra.mxu0 0
    %967 = vmatprep.subr.bf16.mxu0 0
    %968 = vmatpush1.bf16.msra.mxu0 0
    %969 = vmatprep.subr.bf16.mxu0 %v472
    %970 = vmatpush1.bf16.msra.mxu0 %v471
    %971 = vmatprep.subr.bf16.mxu0 %v470
    %972 = vmatpush1.bf16.msra.mxu0 %v469
    %973 = vmatprep.subr.bf16.mxu0 %v468
    %974 = vmatpush1.bf16.msra.mxu0 %v467
    %975 = vmatprep.subr.bf16.mxu0 %v466
    %976 = vmatpush1.bf16.msra.mxu0 %v465
    %977 = vmatprep.subr.bf16.mxu0 0
    %978 = vmatpush2.bf16.msra.mxu0 0
    %979 = vmatprep.subr.bf16.mxu0 0
    %980 = vmatpush2.bf16.msra.mxu0 0
    %981 = vmatprep.subr.bf16.mxu0 0
    %982 = vmatpush2.bf16.msra.mxu0 0
    %983 = vmatprep.subr.bf16.mxu0 0
    %984 = vmatpush2.bf16.msra.mxu0 0
    %985 = vmatprep.subr.bf16.mxu0 0
    %986 = vmatpush2.bf16.msra.mxu0 0
    %987 = vmatprep.subr.bf16.mxu0 0
    %988 = vmatpush2.bf16.msra.mxu0 0
    %989 = vmatprep.subr.bf16.mxu0 0
    %990 = vmatpush2.bf16.msra.mxu0 0
    %991 = vmatprep.subr.bf16.mxu0 0
    %992 = vmatpush2.bf16.msra.mxu0 0
    %993 = vmatprep.mubr.bf16.mxu0 0
    %994 = vmatmul.mubr.bf16.gmra.mxu0 %v959
    %v995 = vpop.f32.mrf.mxu0
    %v996 = vadd.f32 0.0, %v995
    %v997 = vpop.f32.mrf.mxu0
    %v998 = vadd.f32 0.0, %v997
    %v999 = vpop.f32.mrf.mxu0
    %v1000 = vadd.f32 0.0, %v999
    %v1001 = vpop.f32.mrf.mxu0
    %v1002 = vadd.f32 0.0, %v1001
    %1003 = vdwg.mxu0
    %v1004 = vadd.f32 %v953, %v996
    %v1005 = vadd.f32 %v954, %v998
    %v1006 = vadd.f32 %v955, %v1000
    %v1007 = vadd.f32 %v956, %v1002
    %v1008 = vxor.u32 %v1004, 2147483648
    %v1009 = vxor.u32 %v1005, 2147483648
    %v1010 = vxor.u32 %v1006, 2147483648
    %v1011 = vxor.u32 %v1007, 2147483648
    %v1012 = vmul.f32 %v1008, 1.442695
    %v1013 = vpow.pop %v1012
    %v1014 = vmul.f32 %v1009, 1.442695
    %v1015 = vpow.pop %v1014
    %v1016 = vmul.f32 %v1010, 1.442695
    %v1017 = vpow.pop %v1016
    %v1018 = vmul.f32 %v1011, 1.442695
    %v1019 = vpow.pop %v1018
    %v1020 = vadd.f32 %v1013, 1.0
    %v1021 = vadd.f32 %v1015, 1.0
    %v1022 = vadd.f32 %v1017, 1.0
    %v1023 = vadd.f32 %v1019, 1.0
    %v1024 = vrcp.pop %v1020
    %v1025 = vmul.f32 1.0, %v1024
    %v1026 = vrcp.pop %v1021
    %v1027 = vmul.f32 1.0, %v1026
    %v1028 = vrcp.pop %v1022
    %v1029 = vmul.f32 1.0, %v1028
    %v1030 = vrcp.pop %v1023
    %v1031 = vmul.f32 1.0, %v1030
    %v1032 = vtanh.pop %v1005
    %v1033 = vtanh.pop %v1007
    %v1034 = vmul.f32 %v1025, %v937
    %v1035 = vmul.f32 %v1029, %v938
    %1038 = vrot.lane.b32.xlu0 %v1032, 64
    %v1039 = vpop.permute.xlu0 %1038
    %1040 = vrot.lane.b32.xlu0 %v1033, 64
    %v1041 = vpop.permute.xlu0 %1040
    %v1044 = vmul.f32 %v1025, %v1039
    %v1045 = vmul.f32 %v1029, %v1041
    %1048 = vrot.lane.b32.xlu0 %v1044, 64
    %v1049 = vpop.permute.xlu0 %1048
    %1050 = vrot.lane.b32.xlu0 %v1045, 64
    %v1051 = vpop.permute.xlu0 %1050
    %v1054 = vadd.f32 %v1034, %v1049
    %v1055 = vadd.f32 %v1035, %v1051
    %v1056 = vtanh.pop %v1054
    %v1057 = vtanh.pop %v1055
    %1060 = vrot.lane.b32.xlu0 %v1056, 64
    %v1061 = vpop.permute.xlu0 %1060
    %1062 = vrot.lane.b32.xlu0 %v1057, 64
    %v1063 = vpop.permute.xlu0 %1062
    %v1066 = vmul.f32 %v1027, %v1061
    %v1067 = vmul.f32 %v1031, %v1063
    %v1068 = vld [vmem:[#allocation2 + $0x60] sm:$0xff]
    %v1069 = vld [vmem:[#allocation2 + $0x68] sm:$0xff]
    %v1070 = vunpack.c.l.bf16 %v1068
    %v1071 = vunpack.c.h.bf16 %v1068
    %v1072 = vunpack.c.l.bf16 %v1069
    %v1073 = vunpack.c.h.bf16 %v1069
    %v1074 = vpack.c.bf16 %v1067, %v1066
    %v1076 = vsel %vm481, %v1074, 0
    %1078 = vmatprep.subr.bf16.mxu0 0
    %1079 = vmatpush1.bf16.msra.mxu0 0
    %1080 = vmatprep.subr.bf16.mxu0 0
    %1081 = vmatpush1.bf16.msra.mxu0 0
    %1082 = vmatprep.subr.bf16.mxu0 0
    %1083 = vmatpush1.bf16.msra.mxu0 0
    %1084 = vmatprep.subr.bf16.mxu0 0
    %1085 = vmatpush1.bf16.msra.mxu0 0
    %1086 = vmatprep.subr.bf16.mxu0 %v472
    %1087 = vmatpush1.bf16.msra.mxu0 %v471
    %1088 = vmatprep.subr.bf16.mxu0 %v470
    %1089 = vmatpush1.bf16.msra.mxu0 %v469
    %1090 = vmatprep.subr.bf16.mxu0 %v468
    %1091 = vmatpush1.bf16.msra.mxu0 %v467
    %1092 = vmatprep.subr.bf16.mxu0 %v466
    %1093 = vmatpush1.bf16.msra.mxu0 %v465
    %1094 = vmatprep.subr.bf16.mxu0 0
    %1095 = vmatpush2.bf16.msra.mxu0 0
    %1096 = vmatprep.subr.bf16.mxu0 0
    %1097 = vmatpush2.bf16.msra.mxu0 0
    %1098 = vmatprep.subr.bf16.mxu0 0
    %1099 = vmatpush2.bf16.msra.mxu0 0
    %1100 = vmatprep.subr.bf16.mxu0 0
    %1101 = vmatpush2.bf16.msra.mxu0 0
    %1102 = vmatprep.subr.bf16.mxu0 0
    %1103 = vmatpush2.bf16.msra.mxu0 0
    %1104 = vmatprep.subr.bf16.mxu0 0
    %1105 = vmatpush2.bf16.msra.mxu0 0
    %1106 = vmatprep.subr.bf16.mxu0 0
    %1107 = vmatpush2.bf16.msra.mxu0 0
    %1108 = vmatprep.subr.bf16.mxu0 0
    %1109 = vmatpush2.bf16.msra.mxu0 0
    %1110 = vmatprep.mubr.bf16.mxu0 0
    %1111 = vmatmul.mubr.bf16.gmra.mxu0 %v1076
    %v1112 = vpop.f32.mrf.mxu0
    %v1113 = vadd.f32 0.0, %v1112
    %v1114 = vpop.f32.mrf.mxu0
    %v1115 = vadd.f32 0.0, %v1114
    %v1116 = vpop.f32.mrf.mxu0
    %v1117 = vadd.f32 0.0, %v1116
    %v1118 = vpop.f32.mrf.mxu0
    %v1119 = vadd.f32 0.0, %v1118
    %1120 = vdwg.mxu0
    %v1121 = vadd.f32 %v1070, %v1113
    %v1122 = vadd.f32 %v1071, %v1115
    %v1123 = vadd.f32 %v1072, %v1117
    %v1124 = vadd.f32 %v1073, %v1119
    %v1125 = vxor.u32 %v1121, 2147483648
    %v1126 = vxor.u32 %v1122, 2147483648
    %v1127 = vxor.u32 %v1123, 2147483648
    %v1128 = vxor.u32 %v1124, 2147483648
    %v1129 = vmul.f32 %v1125, 1.442695
    %v1130 = vpow.pop %v1129
    %v1131 = vmul.f32 %v1126, 1.442695
    %v1132 = vpow.pop %v1131
    %v1133 = vmul.f32 %v1127, 1.442695
    %v1134 = vpow.pop %v1133
    %v1135 = vmul.f32 %v1128, 1.442695
    %v1136 = vpow.pop %v1135
    %v1137 = vadd.f32 %v1130, 1.0
    %v1138 = vadd.f32 %v1132, 1.0
    %v1139 = vadd.f32 %v1134, 1.0
    %v1140 = vadd.f32 %v1136, 1.0
    %v1141 = vrcp.pop %v1137
    %v1142 = vmul.f32 1.0, %v1141
    %v1143 = vrcp.pop %v1138
    %v1144 = vmul.f32 1.0, %v1143
    %v1145 = vrcp.pop %v1139
    %v1146 = vmul.f32 1.0, %v1145
    %v1147 = vrcp.pop %v1140
    %v1148 = vmul.f32 1.0, %v1147
    %v1149 = vtanh.pop %v1122
    %v1150 = vtanh.pop %v1124
    %v1151 = vmul.f32 %v1142, %v1054
    %v1152 = vmul.f32 %v1146, %v1055
    %1155 = vrot.lane.b32.xlu0 %v1149, 64
    %v1156 = vpop.permute.xlu0 %1155
    %1157 = vrot.lane.b32.xlu0 %v1150, 64
    %v1158 = vpop.permute.xlu0 %1157
    %v1161 = vmul.f32 %v1142, %v1156
    %v1162 = vmul.f32 %v1146, %v1158
    %1165 = vrot.lane.b32.xlu0 %v1161, 64
    %v1166 = vpop.permute.xlu0 %1165
    %1167 = vrot.lane.b32.xlu0 %v1162, 64
    %v1168 = vpop.permute.xlu0 %1167
    %v1171 = vadd.f32 %v1151, %v1166
    %v1172 = vadd.f32 %v1152, %v1168
    %v1173 = vtanh.pop %v1171
    %v1174 = vtanh.pop %v1172
    %1177 = vrot.lane.b32.xlu0 %v1173, 64
    %v1178 = vpop.permute.xlu0 %1177
    %1179 = vrot.lane.b32.xlu0 %v1174, 64
    %v1180 = vpop.permute.xlu0 %1179
    %v1183 = vmul.f32 %v1144, %v1178
    %v1184 = vmul.f32 %v1148, %v1180
    %v1185 = vld [vmem:[#allocation2 + $0x70] sm:$0xff]
    %v1186 = vld [vmem:[#allocation2 + $0x78] sm:$0xff]
    %v1187 = vunpack.c.l.bf16 %v1185
    %v1188 = vunpack.c.h.bf16 %v1185
    %v1189 = vunpack.c.l.bf16 %v1186
    %v1190 = vunpack.c.h.bf16 %v1186
    %v1191 = vpack.c.bf16 %v1184, %v1183
    %v1193 = vsel %vm481, %v1191, 0
    %1195 = vmatprep.subr.bf16.mxu0 0
    %1196 = vmatpush1.bf16.msra.mxu0 0
    %1197 = vmatprep.subr.bf16.mxu0 0
    %1198 = vmatpush1.bf16.msra.mxu0 0
    %1199 = vmatprep.subr.bf16.mxu0 0
    %1200 = vmatpush1.bf16.msra.mxu0 0
    %1201 = vmatprep.subr.bf16.mxu0 0
    %1202 = vmatpush1.bf16.msra.mxu0 0
    %1203 = vmatprep.subr.bf16.mxu0 %v472
    %1204 = vmatpush1.bf16.msra.mxu0 %v471
    %1205 = vmatprep.subr.bf16.mxu0 %v470
    %1206 = vmatpush1.bf16.msra.mxu0 %v469
    %1207 = vmatprep.subr.bf16.mxu0 %v468
    %1208 = vmatpush1.bf16.msra.mxu0 %v467
    %1209 = vmatprep.subr.bf16.mxu0 %v466
    %1210 = vmatpush1.bf16.msra.mxu0 %v465
    %1211 = vmatprep.subr.bf16.mxu0 0
    %1212 = vmatpush2.bf16.msra.mxu0 0
    %1213 = vmatprep.subr.bf16.mxu0 0
    %1214 = vmatpush2.bf16.msra.mxu0 0
    %1215 = vmatprep.subr.bf16.mxu0 0
    %1216 = vmatpush2.bf16.msra.mxu0 0
    %1217 = vmatprep.subr.bf16.mxu0 0
    %1218 = vmatpush2.bf16.msra.mxu0 0
    %1219 = vmatprep.subr.bf16.mxu0 0
    %1220 = vmatpush2.bf16.msra.mxu0 0
    %1221 = vmatprep.subr.bf16.mxu0 0
    %1222 = vmatpush2.bf16.msra.mxu0 0
    %1223 = vmatprep.subr.bf16.mxu0 0
    %1224 = vmatpush2.bf16.msra.mxu0 0
    %1225 = vmatprep.subr.bf16.mxu0 0
    %1226 = vmatpush2.bf16.msra.mxu0 0
    %1227 = vmatprep.mubr.bf16.mxu0 0
    %1228 = vmatmul.mubr.bf16.gmra.mxu0 %v1193
    %v1229 = vpop.f32.mrf.mxu0
    %v1230 = vadd.f32 0.0, %v1229
    %v1231 = vpop.f32.mrf.mxu0
    %v1232 = vadd.f32 0.0, %v1231
    %v1233 = vpop.f32.mrf.mxu0
    %v1234 = vadd.f32 0.0, %v1233
    %v1235 = vpop.f32.mrf.mxu0
    %v1236 = vadd.f32 0.0, %v1235
    %1237 = vdwg.mxu0
    %v1238 = vadd.f32 %v1187, %v1230
    %v1239 = vadd.f32 %v1188, %v1232
    %v1240 = vadd.f32 %v1189, %v1234
    %v1241 = vadd.f32 %v1190, %v1236
    %v1242 = vxor.u32 %v1238, 2147483648
    %v1243 = vxor.u32 %v1239, 2147483648
    %v1244 = vxor.u32 %v1240, 2147483648
    %v1245 = vxor.u32 %v1241, 2147483648
    %v1246 = vmul.f32 %v1242, 1.442695
    %v1247 = vpow.pop %v1246
    %v1248 = vmul.f32 %v1243, 1.442695
    %v1249 = vpow.pop %v1248
    %v1250 = vmul.f32 %v1244, 1.442695
    %v1251 = vpow.pop %v1250
    %v1252 = vmul.f32 %v1245, 1.442695
    %v1253 = vpow.pop %v1252
    %v1254 = vadd.f32 %v1247, 1.0
    %v1255 = vadd.f32 %v1249, 1.0
    %v1256 = vadd.f32 %v1251, 1.0
    %v1257 = vadd.f32 %v1253, 1.0
    %v1258 = vrcp.pop %v1254
    %v1259 = vmul.f32 1.0, %v1258
    %v1260 = vrcp.pop %v1255
    %v1261 = vmul.f32 1.0, %v1260
    %v1262 = vrcp.pop %v1256
    %v1263 = vmul.f32 1.0, %v1262
    %v1264 = vrcp.pop %v1257
    %v1265 = vmul.f32 1.0, %v1264
    %v1266 = vtanh.pop %v1239
    %v1267 = vtanh.pop %v1241
    %v1268 = vmul.f32 %v1259, %v1171
    %v1269 = vmul.f32 %v1263, %v1172
    %1272 = vrot.lane.b32.xlu0 %v1266, 64
    %v1273 = vpop.permute.xlu0 %1272
    %1274 = vrot.lane.b32.xlu0 %v1267, 64
    %v1275 = vpop.permute.xlu0 %1274
    %v1278 = vmul.f32 %v1259, %v1273
    %v1279 = vmul.f32 %v1263, %v1275
    %1282 = vrot.lane.b32.xlu0 %v1278, 64
    %v1283 = vpop.permute.xlu0 %1282
    %1284 = vrot.lane.b32.xlu0 %v1279, 64
    %v1285 = vpop.permute.xlu0 %1284
    %v1288 = vadd.f32 %v1268, %v1283
    %v1289 = vadd.f32 %v1269, %v1285
    %v1290 = vtanh.pop %v1288
    %v1291 = vtanh.pop %v1289
    %1294 = vrot.lane.b32.xlu0 %v1290, 64
    %v1295 = vpop.permute.xlu0 %1294
    %1296 = vrot.lane.b32.xlu0 %v1291, 64
    %v1297 = vpop.permute.xlu0 %1296
    %v1300 = vmul.f32 %v1261, %v1295
    %v1301 = vmul.f32 %v1265, %v1297
    %v1302 = vpack.c.bf16 %v1301, %v1300
    %v1303 = vld [vmem:[#allocation3] sm:$0xf]
    %v1304 = vld [vmem:[#allocation3 + $0x4] sm:$0xf]
    %v1305 = vld [vmem:[#allocation3 + $0x8] sm:$0xf]
    %v1306 = vld [vmem:[#allocation3 + $0xc] sm:$0xf]
    %v1307 = vld [vmem:[#allocation3 + $0x10] sm:$0xf]
    %v1308 = vld [vmem:[#allocation3 + $0x14] sm:$0xf]
    %v1309 = vld [vmem:[#allocation3 + $0x18] sm:$0xf]
    %v1310 = vld [vmem:[#allocation3 + $0x1c] sm:$0xf]
    %v1311 = vld [vmem:[%s5] sm:$0x1]
    %v1313 = vlaneseq
    %v1314 = vshrl.u32 %v1313, 7
    %v1315 = vsub.s32 0, %v1314
    %v1316 = vrot.slane %v1311, %v1315
    %v1326 = vunpack.c.l.b16 %v1303
    %v1327 = vunpack.c.l.b16 %v1304
    %v1328 = vunpack.c.l.b16 %v1305
    %v1329 = vunpack.c.l.b16 %v1306
    %v1330 = vunpack.c.l.b16 %v1307
    %v1331 = vunpack.c.l.b16 %v1308
    %v1332 = vunpack.c.l.b16 %v1309
    %v1333 = vunpack.c.l.b16 %v1310
    %v1334 = vpack.c.b16 %v1327, %v1326
    %v1335 = vpack.c.b16 %v1329, %v1328
    %v1336 = vpack.c.b16 %v1331, %v1330
    %v1337 = vpack.c.b16 %v1333, %v1332
    %v1343 = vsel %vm481, %v1302, 0
    %1345 = vmatprep.subr.bf16.mxu0 0
    %1346 = vmatpush1.bf16.msra.mxu0 0
    %1347 = vmatprep.subr.bf16.mxu0 0
    %1348 = vmatpush1.bf16.msra.mxu0 0
    %1349 = vmatprep.subr.bf16.mxu0 0
    %1350 = vmatpush1.bf16.msra.mxu0 0
    %1351 = vmatprep.subr.bf16.mxu0 0
    %1352 = vmatpush1.bf16.msra.mxu0 0
    %1353 = vmatprep.subr.bf16.mxu0 0
    %1354 = vmatpush1.bf16.msra.mxu0 %v1337
    %1355 = vmatprep.subr.bf16.mxu0 0
    %1356 = vmatpush1.bf16.msra.mxu0 %v1336
    %1357 = vmatprep.subr.bf16.mxu0 0
    %1358 = vmatpush1.bf16.msra.mxu0 %v1335
    %1359 = vmatprep.subr.bf16.mxu0 0
    %1360 = vmatpush1.bf16.msra.mxu0 %v1334
    %1361 = vmatprep.subr.bf16.mxu0 0
    %1362 = vmatpush2.bf16.msra.mxu0 0
    %1363 = vmatprep.subr.bf16.mxu0 0
    %1364 = vmatpush2.bf16.msra.mxu0 0
    %1365 = vmatprep.subr.bf16.mxu0 0
    %1366 = vmatpush2.bf16.msra.mxu0 0
    %1367 = vmatprep.subr.bf16.mxu0 0
    %1368 = vmatpush2.bf16.msra.mxu0 0
    %1369 = vmatprep.subr.bf16.mxu0 0
    %1370 = vmatpush2.bf16.msra.mxu0 0
    %1371 = vmatprep.subr.bf16.mxu0 0
    %1372 = vmatpush2.bf16.msra.mxu0 0
    %1373 = vmatprep.subr.bf16.mxu0 0
    %1374 = vmatpush2.bf16.msra.mxu0 0
    %1375 = vmatprep.subr.bf16.mxu0 0
    %1376 = vmatpush2.bf16.msra.mxu0 0
    %1377 = vmatprep.mubr.bf16.mxu0 0
    %1378 = vmatmul.mubr.bf16.gmra.mxu0 %v1343
    %v1379 = vpop.f32.mrf.mxu0
    %v1380 = vadd.f32 %v1316, %v1379
    %v1381 = vpop.f32.mrf.mxu0
    %v1382 = vpop.f32.mrf.mxu0
    %v1383 = vadd.f32 %v1316, %v1382
    %v1384 = vpop.f32.mrf.mxu0
    %1385 = vdwg.mxu0
    %1386 = vst [vmem:[%s6] sm:$0xff] %v1380
    %1387 = vst [vmem:[%s6 + $0x8] sm:$0xff] %v1383
    // Predicated region
    $region30: #{rnn_classifier_fwd.1} parent=1 // pred_check
      _
    $region31: #{rnn_classifier_fwd.1} parent=1 // pred_check_branch
      %1389 = sbr.rel (0) target = $region33
    $region32: #{rnn_classifier_fwd.1} parent=1 // pred_region
      _
    $region33: #{rnn_classifier_fwd.1} parent=1 // pred_fallthru
      _
    // Predicated region
    $region34: #{rnn_classifier_fwd.1} parent=1 // pred_check
      _
    $region35: #{rnn_classifier_fwd.1} parent=1 // pred_check_branch
      %1391 = sbr.rel (0) target = $region37
    $region36: #{rnn_classifier_fwd.1} parent=1 // pred_region
      _
    $region37: #{rnn_classifier_fwd.1} parent=1 // pred_fallthru
      _
    %1392 = vsyncpa [#allocation4], 1

</llo_original>
